<compile_context>
chip_gen: v7x
topology: tpu7x:2x2x1
jax: 0.10.0
libtpu: 0.0.40
codegen_flags: <defaults>
</compile_context>

<pallas_src>
import jax
import jax.numpy as jnp
from jax.experimental import pallas as pl
from jax.experimental.pallas import tpu as pltpu


def value_net_kernel(xt_ref, w1_ref, b1_ref, w2_ref, b2_ref, w3_ref, b3_ref, out_ref):
    xt = xt_ref[...]                                   # (S, TILE_B) f32, S = state_dims
    state_dims = xt.shape[0]

    # ---- Layer 1 on the VPU: K = state_dims is tiny, an MXU pass would be ~all padding.
    w1 = w1_ref[...].astype(jnp.float32)               # (FC1, S)  PyTorch (out, in) layout
    acc = w1[:, 0:1] * xt[0:1, :]                      # (FC1, TILE_B)
    for k in range(1, state_dims):                     # static, unrolled (state_dims small)
        acc = acc + w1[:, k:k + 1] * xt[k:k + 1, :]
    h1 = jnp.maximum(acc + b1_ref[...], 0.0)           # bias (FC1, 1) broadcasts over lanes

    # ---- Layer 2 on the MXU: (FC2, FC1) @ (FC1, TILE_B), bf16 inputs, f32 accumulation.
    h2 = jnp.dot(w2_ref[...], h1.astype(jnp.bfloat16),
                 preferred_element_type=jnp.float32) + b2_ref[...]
    h2 = jnp.maximum(h2, 0.0)                          # (FC2, TILE_B) f32

    # ---- Layer 3 (FC2 -> 1) on VPU + sublane reduce: lane-dense (1, TILE_B) result.
    w3 = w3_ref[...].astype(jnp.float32)               # (FC2, 1) column
    v = jnp.sum(h2 * w3, axis=0, keepdims=True) + b3_ref[...]   # (1, TILE_B)
    out_ref[...] = v.astype(out_ref.dtype)


def value_network_forward(x, params, tile_b=1024):
    """x: (B, state_dims) float32.  params: bf16 weights in PyTorch (out, in)
    layout (w3 stored as an (fc2, 1) column), f32 biases shaped (out, 1)."""
    w1, b1, w2, b2, w3, b3 = (params["w1"], params["b1"], params["w2"],
                              params["b2"], params["w3"], params["b3"])
    B, state_dims = x.shape

    # Tile choice: big tiles (1024) to amortize per-grid-step overhead at large
    # batch; a single 128-aligned tile for small inference batches.
    if B <= tile_b:
        tile = max(128, ((B + 127) // 128) * 128)
        b_pad = tile
    else:
        tile = tile_b
        b_pad = ((B + tile - 1) // tile) * tile

    # Pad batch and transpose so the batch lives on the lane axis: (S, b_pad).
    xt = jnp.pad(x, ((0, b_pad - B), (0, 0))).T

    # Weights/biases: full blocks, constant index_map -> VMEM-resident across tiles.
    def const(a):
        return pl.BlockSpec(a.shape, lambda i, _nd=a.ndim: (0,) * _nd)

    out = pl.pallas_call(
        value_net_kernel,
        out_shape=jax.ShapeDtypeStruct((1, b_pad), jnp.float32),
        grid=(b_pad // tile,),
        in_specs=[
            pl.BlockSpec((state_dims, tile), lambda i: (0, i)),   # x^T: tiled over batch (lanes)
            const(w1), const(b1), const(w2), const(b2), const(w3), const(b3),
        ],
        out_specs=pl.BlockSpec((1, tile), lambda i: (0, i)),      # lane-dense output row
        compiler_params=pltpu.CompilerParams(
            dimension_semantics=("parallel",),
        ),
    )(xt, w1, b1, w2, b2, w3, b3)

    return out[0, :B][:, None]                                    # (B, 1)


def init_params(key, state_dims=4, fc1_dims=256, fc2_dims=256):
    """PyTorch nn.Linear-style init: U[-1/sqrt(fan_in), +1/sqrt(fan_in)].
    Weights stored bf16 in (out_features, in_features) layout; biases f32 (out, 1).
    w3 is stored as an (fc2, 1) column (transpose of PyTorch's (1, fc2))."""
    ks = jax.random.split(key, 6)

    def linear(kw, kb, fan_in, fan_out):
        bound = 1.0 / jnp.sqrt(jnp.float32(fan_in))
        w = jax.random.uniform(kw, (fan_out, fan_in), jnp.float32, -bound, bound)
        b = jax.random.uniform(kb, (fan_out, 1), jnp.float32, -bound, bound)
        return w.astype(jnp.bfloat16), b

    w1, b1 = linear(ks[0], ks[1], state_dims, fc1_dims)
    w2, b2 = linear(ks[2], ks[3], fc1_dims, fc2_dims)
    w3_row, b3 = linear(ks[4], ks[5], fc2_dims, 1)     # (1, fc2), (1, 1)
    return {"w1": w1, "b1": b1, "w2": w2, "b2": b2, "w3": w3_row.T, "b3": b3}


def value_network_ref(x, params):
    """Pure-JAX reference mirroring the kernel's dtype flow."""
    w1 = params["w1"].astype(jnp.float32)                          # (fc1, s)
    h1 = jnp.maximum(
        jnp.dot(x, w1.T, precision=jax.lax.Precision.HIGHEST) + params["b1"][:, 0], 0.0)
    h2 = jnp.dot(h1.astype(jnp.bfloat16), params["w2"].T,
                 preferred_element_type=jnp.float32) + params["b2"][:, 0]
    h2 = jnp.maximum(h2, 0.0)
    w3 = params["w3"].astype(jnp.float32)[:, 0]                    # (fc2,)
    v = jnp.sum(h2 * w3[None, :], axis=-1, keepdims=True) + params["b3"][0, 0]
    return v


if __name__ == "__main__":
    key = jax.random.PRNGKey(0)
    k_param, k_x1, k_x2 = jax.random.split(key, 3)

    state_dims = 4   # CartPole-v0 observation dim
    params = init_params(k_param, state_dims=state_dims, fc1_dims=256, fc2_dims=256)

    # Small inference batch (single 128-row tile).
    x_small = jax.random.normal(k_x1, (8, state_dims), jnp.float32)
    out_small = jax.block_until_ready(value_network_forward(x_small, params))
    ref_small = value_network_ref(x_small, params)
    assert out_small.shape == (8, 1), out_small.shape
    assert jnp.allclose(out_small, ref_small, atol=2e-3, rtol=2e-3), "small-batch mismatch"

    # Larger ragged batch exercising the multi-tile (TILE_B=1024) path.
    x_large = jax.random.normal(k_x2, (2500, state_dims), jnp.float32)
    out_large = jax.block_until_ready(value_network_forward(x_large, params))
    ref_large = value_network_ref(x_large, params)
    assert out_large.shape == (2500, 1), out_large.shape
    assert jnp.allclose(out_large, ref_large, atol=2e-3, rtol=2e-3), "large-batch mismatch"

    print("KERNEL_OK")
</pallas_src>

<mosaic_0001>
module attributes {stable_mosaic.version = 11 : i64} {
  func.func @value_net_kernel(%arg0: i32, %arg1: memref<4x128xf32, #tpu.memory_space<vmem>>, %arg2: memref<256x4xbf16, #tpu.memory_space<vmem>>, %arg3: memref<256x1xf32, #tpu.memory_space<vmem>>, %arg4: memref<256x256xbf16, #tpu.memory_space<vmem>>, %arg5: memref<256x1xf32, #tpu.memory_space<vmem>>, %arg6: memref<256x1xbf16, #tpu.memory_space<vmem>>, %arg7: memref<1x1xf32, #tpu.memory_space<vmem>>, %arg8: memref<1x128xf32, #tpu.memory_space<vmem>>) attributes {dimension_semantics = [#tpu.dimension_semantics<parallel>], iteration_bounds = array<i64: 1>, scalar_prefetch = 0 : i64, scratch_operands = 0 : i64, tpu.core_type = #tpu.core_type<tc>, window_params = [{transform_indices = @transform_0, window_bounds = array<i64: 4, 128>}, {pipeline_mode = #tpu.pipeline_mode<synchronous>, transform_indices = @transform_1, window_bounds = array<i64: 256, 4>}, {pipeline_mode = #tpu.pipeline_mode<synchronous>, transform_indices = @transform_2, window_bounds = array<i64: 256, 1>}, {pipeline_mode = #tpu.pipeline_mode<synchronous>, transform_indices = @transform_3, window_bounds = array<i64: 256, 256>}, {pipeline_mode = #tpu.pipeline_mode<synchronous>, transform_indices = @transform_4, window_bounds = array<i64: 256, 1>}, {pipeline_mode = #tpu.pipeline_mode<synchronous>, transform_indices = @transform_5, window_bounds = array<i64: 256, 1>}, {pipeline_mode = #tpu.pipeline_mode<synchronous>, transform_indices = @transform_6, window_bounds = array<i64: 1, 1>}, {transform_indices = @transform_7, window_bounds = array<i64: 1, 128>}]} {
    %c0 = arith.constant 0 : index
    %c0_0 = arith.constant 0 : index
    %0 = vector.load %arg1[%c0, %c0_0] : memref<4x128xf32, #tpu.memory_space<vmem>>, vector<4x128xf32>
    %c0_1 = arith.constant 0 : index
    %c0_2 = arith.constant 0 : index
    %1 = vector.load %arg2[%c0_1, %c0_2] : memref<256x4xbf16, #tpu.memory_space<vmem>>, vector<256x4xbf16>
    %2 = arith.extf %1 : vector<256x4xbf16> to vector<256x4xf32>
    %3 = vector.extract_strided_slice %2 {offsets = [0, 0], sizes = [256, 1], strides = [1, 1]} : vector<256x4xf32> to vector<256x1xf32>
    %4 = vector.extract_strided_slice %0 {offsets = [0, 0], sizes = [1, 128], strides = [1, 1]} : vector<4x128xf32> to vector<1x128xf32>
    %5 = vector.broadcast %3 : vector<256x1xf32> to vector<256x128xf32>
    %6 = vector.broadcast %4 : vector<1x128xf32> to vector<256x128xf32>
    %7 = arith.mulf %5, %6 : vector<256x128xf32>
    %8 = vector.extract_strided_slice %2 {offsets = [0, 1], sizes = [256, 1], strides = [1, 1]} : vector<256x4xf32> to vector<256x1xf32>
    %9 = vector.extract_strided_slice %0 {offsets = [1, 0], sizes = [1, 128], strides = [1, 1]} : vector<4x128xf32> to vector<1x128xf32>
    %10 = vector.broadcast %8 : vector<256x1xf32> to vector<256x128xf32>
    %11 = vector.broadcast %9 : vector<1x128xf32> to vector<256x128xf32>
    %12 = arith.mulf %10, %11 : vector<256x128xf32>
    %13 = arith.addf %7, %12 : vector<256x128xf32>
    %14 = vector.extract_strided_slice %2 {offsets = [0, 2], sizes = [256, 1], strides = [1, 1]} : vector<256x4xf32> to vector<256x1xf32>
    %15 = vector.extract_strided_slice %0 {offsets = [2, 0], sizes = [1, 128], strides = [1, 1]} : vector<4x128xf32> to vector<1x128xf32>
    %16 = vector.broadcast %14 : vector<256x1xf32> to vector<256x128xf32>
    %17 = vector.broadcast %15 : vector<1x128xf32> to vector<256x128xf32>
    %18 = arith.mulf %16, %17 : vector<256x128xf32>
    %19 = arith.addf %13, %18 : vector<256x128xf32>
    %20 = vector.extract_strided_slice %2 {offsets = [0, 3], sizes = [256, 1], strides = [1, 1]} : vector<256x4xf32> to vector<256x1xf32>
    %21 = vector.extract_strided_slice %0 {offsets = [3, 0], sizes = [1, 128], strides = [1, 1]} : vector<4x128xf32> to vector<1x128xf32>
    %22 = vector.broadcast %20 : vector<256x1xf32> to vector<256x128xf32>
    %23 = vector.broadcast %21 : vector<1x128xf32> to vector<256x128xf32>
    %24 = arith.mulf %22, %23 : vector<256x128xf32>
    %25 = arith.addf %19, %24 : vector<256x128xf32>
    %c0_3 = arith.constant 0 : index
    %c0_4 = arith.constant 0 : index
    %26 = vector.load %arg3[%c0_3, %c0_4] : memref<256x1xf32, #tpu.memory_space<vmem>>, vector<256x1xf32>
    %27 = vector.broadcast %26 : vector<256x1xf32> to vector<256x128xf32>
    %28 = arith.addf %25, %27 : vector<256x128xf32>
    %cst = arith.constant 0.000000e+00 : f32
    %29 = vector.broadcast %cst : f32 to vector<256x128xf32>
    %30 = arith.maximumf %28, %29 : vector<256x128xf32>
    %c0_5 = arith.constant 0 : index
    %c0_6 = arith.constant 0 : index
    %31 = vector.load %arg4[%c0_5, %c0_6] : memref<256x256xbf16, #tpu.memory_space<vmem>>, vector<256x256xbf16>
    %32 = arith.truncf %30 : vector<256x128xf32> to vector<256x128xbf16>
    %cst_7 = arith.constant dense<0.000000e+00> : vector<256x128xf32>
    %33 = tpu.matmul %31, %32, %cst_7 {dimension_numbers = #tpu.dot_dimension_numbers<[1], [0], [0], [1], [0, 0, 1, 1], [], []>} : vector<256x256xbf16>, vector<256x128xbf16>, vector<256x128xf32> -> vector<256x128xf32>
    %c0_8 = arith.constant 0 : index
    %c0_9 = arith.constant 0 : index
    %34 = vector.load %arg5[%c0_8, %c0_9] : memref<256x1xf32, #tpu.memory_space<vmem>>, vector<256x1xf32>
    %35 = vector.broadcast %34 : vector<256x1xf32> to vector<256x128xf32>
    %36 = arith.addf %33, %35 : vector<256x128xf32>
    %cst_10 = arith.constant 0.000000e+00 : f32
    %37 = vector.broadcast %cst_10 : f32 to vector<256x128xf32>
    %38 = arith.maximumf %36, %37 : vector<256x128xf32>
    %c0_11 = arith.constant 0 : index
    %c0_12 = arith.constant 0 : index
    %39 = vector.load %arg6[%c0_11, %c0_12] : memref<256x1xbf16, #tpu.memory_space<vmem>>, vector<256x1xbf16>
    %40 = arith.extf %39 : vector<256x1xbf16> to vector<256x1xf32>
    %41 = vector.broadcast %40 : vector<256x1xf32> to vector<256x128xf32>
    %42 = arith.mulf %38, %41 : vector<256x128xf32>
    %cst_13 = arith.constant dense<0.000000e+00> : vector<128xf32>
    %43 = vector.multi_reduction <add>, %42, %cst_13 [0] : vector<256x128xf32> to vector<128xf32>
    %44 = vector.shape_cast %43 : vector<128xf32> to vector<1x128xf32>
    %c0_14 = arith.constant 0 : index
    %c0_15 = arith.constant 0 : index
    %45 = vector.load %arg7[%c0_14, %c0_15] : memref<1x1xf32, #tpu.memory_space<vmem>>, vector<1x1xf32>
    %46 = vector.broadcast %45 : vector<1x1xf32> to vector<1x128xf32>
    %47 = arith.addf %44, %46 : vector<1x128xf32>
    %c0_16 = arith.constant 0 : index
    %c0_17 = arith.constant 0 : index
    %48 = vector.load %arg8[%c0_16, %c0_17] : memref<1x128xf32, #tpu.memory_space<vmem>>, vector<1x128xf32>
    tpu.vector_store %arg8[%c0_16, %c0_17], %47 {strides = array<i32>} : memref<1x128xf32, #tpu.memory_space<vmem>>, vector<1x128xf32>,
    return
  }
  func.func @transform_0(%arg0: i32) -> (i32, i32) {
    %c0_i32 = arith.constant 0 : i32
    %c0_i32_0 = arith.constant 0 : i32
    return %c0_i32, %arg0 : i32, i32
  }
  func.func @transform_1(%arg0: i32) -> (i32, i32) {
    %c0_i32 = arith.constant 0 : i32
    %c0_i32_0 = arith.constant 0 : i32
    %c0_i32_1 = arith.constant 0 : i32
    return %c0_i32, %c0_i32_0 : i32, i32
  }
  func.func @transform_2(%arg0: i32) -> (i32, i32) {
    %c0_i32 = arith.constant 0 : i32
    %c0_i32_0 = arith.constant 0 : i32
    %c0_i32_1 = arith.constant 0 : i32
    return %c0_i32, %c0_i32_0 : i32, i32
  }
  func.func @transform_3(%arg0: i32) -> (i32, i32) {
    %c0_i32 = arith.constant 0 : i32
    %c0_i32_0 = arith.constant 0 : i32
    %c0_i32_1 = arith.constant 0 : i32
    return %c0_i32, %c0_i32_0 : i32, i32
  }
  func.func @transform_4(%arg0: i32) -> (i32, i32) {
    %c0_i32 = arith.constant 0 : i32
    %c0_i32_0 = arith.constant 0 : i32
    %c0_i32_1 = arith.constant 0 : i32
    return %c0_i32, %c0_i32_0 : i32, i32
  }
  func.func @transform_5(%arg0: i32) -> (i32, i32) {
    %c0_i32 = arith.constant 0 : i32
    %c0_i32_0 = arith.constant 0 : i32
    %c0_i32_1 = arith.constant 0 : i32
    return %c0_i32, %c0_i32_0 : i32, i32
  }
  func.func @transform_6(%arg0: i32) -> (i32, i32) {
    %c0_i32 = arith.constant 0 : i32
    %c0_i32_0 = arith.constant 0 : i32
    %c0_i32_1 = arith.constant 0 : i32
    return %c0_i32, %c0_i32_0 : i32, i32
  }
  func.func @transform_7(%arg0: i32) -> (i32, i32) {
    %c0_i32 = arith.constant 0 : i32
    %c0_i32_0 = arith.constant 0 : i32
    return %c0_i32, %arg0 : i32, i32
  }
}

</mosaic_0001>

<llo_original>
// kernel: tpu_custom_call.1
$region0: #{tpu_custom_call.1}
  #allocation0 [shape = 'u32[]', space=smem, size = 0x4, offset = 0x4, fixed_abs, tag = 'smem constant byte address 0x4 - core index']
  #allocation1 [shape = 'u32[144,128]{1,0:T(1,128)}', space=vmem, size = 0x12000, scoped, tag = 'internal scratch']
  #allocation2 [shape = 'f32[1,1]{1,0:T(1,128)S(1)}', space=vmem, size = 0x200, scoped, tag = 'scoped memory for tpu_custom_call.1']
  %s0 = inlined_call_operand.vmem [shape: f32[4,128], index: 0, kind: input, shape index: {}]
  %s1 = inlined_call_operand.vmem [shape: bf16[256,4], index: 1, kind: input, shape index: {}]
  %s2 = inlined_call_operand.vmem [shape: f32[256,1], index: 2, kind: input, shape index: {}]
  %s3 = inlined_call_operand.vmem [shape: bf16[256,256], index: 3, kind: input, shape index: {}]
  %s4 = inlined_call_operand.vmem [shape: f32[256,1], index: 4, kind: input, shape index: {}]
  %s5 = inlined_call_operand.vmem [shape: bf16[256,1], index: 5, kind: input, shape index: {}]
  %s6 = inlined_call_operand.<no memory space> [shape: f32[1,1], index: 6, kind: input, shape index: {}]
  %s7 = inlined_call_operand.hbm [shape: f32[1,128], index: 7, kind: output, shape index: {}]
  %s8 = sld [smem:[#allocation0]]
  $region38: #{tpu_custom_call.1} parent=0
    _
  %s10 = ssub.s32 1, %s8
  %s11 = scalar_select 0, %s10, %s8
  %v12 = vstv %s6
  %13 = vst [vmem:[#allocation2] sm:$0x1] %v12
  $region1: #{tpu_custom_call.1} parent=0
    #allocation3 [shape = 'u8[512]{0}', space=vmem, size = 0x400, scoped, tag = 'output window, operand 0, single buffered']
    #allocation4 [shape = 's32[1]{0}', space=sflag, size = 0x4, scoped, tag = 'scoped memory for tpu_custom_call.1']
    %14 = vsyncpa [#allocation4], 0
    // Predicated region
    $region2: #{tpu_custom_call.1} parent=1 // pred_check
      _
    $region3: #{tpu_custom_call.1} parent=1 // pred_check_branch
      %16 = sbr.rel (0) target = $region5
    $region4: #{tpu_custom_call.1} parent=1 // pred_region
      _
    $region5: #{tpu_custom_call.1} parent=1 // pred_fallthru
      _
    // Predicated region
    $region6: #{tpu_custom_call.1} parent=1 // pred_check
      _
    $region7: #{tpu_custom_call.1} parent=1 // pred_check_branch
      %18 = sbr.rel (0) target = $region9
    $region8: #{tpu_custom_call.1} parent=1 // pred_region
      _
    $region9: #{tpu_custom_call.1} parent=1 // pred_fallthru
      _
    // Predicated region
    $region10: #{tpu_custom_call.1} parent=1 // pred_check
      _
    $region11: #{tpu_custom_call.1} parent=1 // pred_check_branch
      %20 = sbr.rel (0) target = $region13
    $region12: #{tpu_custom_call.1} parent=1 // pred_region
      _
    $region13: #{tpu_custom_call.1} parent=1 // pred_fallthru
      _
    // Predicated region
    $region14: #{tpu_custom_call.1} parent=1 // pred_check
      _
    $region15: #{tpu_custom_call.1} parent=1 // pred_check_branch
      %22 = sbr.rel (0) target = $region17
    $region16: #{tpu_custom_call.1} parent=1 // pred_region
      _
    $region17: #{tpu_custom_call.1} parent=1 // pred_fallthru
      _
    // Predicated region
    $region18: #{tpu_custom_call.1} parent=1 // pred_check
      _
    $region19: #{tpu_custom_call.1} parent=1 // pred_check_branch
      %24 = sbr.rel (0) target = $region21
    $region20: #{tpu_custom_call.1} parent=1 // pred_region
      _
    $region21: #{tpu_custom_call.1} parent=1 // pred_fallthru
      _
    // Predicated region
    $region22: #{tpu_custom_call.1} parent=1 // pred_check
      _
    $region23: #{tpu_custom_call.1} parent=1 // pred_check_branch
      %26 = sbr.rel (0) target = $region25
    $region24: #{tpu_custom_call.1} parent=1 // pred_region
      _
    $region25: #{tpu_custom_call.1} parent=1 // pred_fallthru
      _
    // Predicated region
    $region26: #{tpu_custom_call.1} parent=1 // pred_check
      _
    $region27: #{tpu_custom_call.1} parent=1 // pred_check_branch
      %28 = sbr.rel (0) target = $region29
    $region28: #{tpu_custom_call.1} parent=1 // pred_region
      _
    $region29: #{tpu_custom_call.1} parent=1 // pred_fallthru
      _
    %v30 = vld [vmem:[%s0] sm:$0xf]
    %v31 = vld [vmem:[%s1] sm:$0xf]
    %v32 = vld [vmem:[%s1 + $0x4] sm:$0xf]
    %v33 = vld [vmem:[%s1 + $0x8] sm:$0xf]
    %v34 = vld [vmem:[%s1 + $0xc] sm:$0xf]
    %v35 = vld [vmem:[%s1 + $0x10] sm:$0xf]
    %v36 = vld [vmem:[%s1 + $0x14] sm:$0xf]
    %v37 = vld [vmem:[%s1 + $0x18] sm:$0xf]
    %v38 = vld [vmem:[%s1 + $0x1c] sm:$0xf]
    %v39 = vld [vmem:[%s1 + $0x20] sm:$0xf]
    %v40 = vld [vmem:[%s1 + $0x24] sm:$0xf]
    %v41 = vld [vmem:[%s1 + $0x28] sm:$0xf]
    %v42 = vld [vmem:[%s1 + $0x2c] sm:$0xf]
    %v43 = vld [vmem:[%s1 + $0x30] sm:$0xf]
    %v44 = vld [vmem:[%s1 + $0x34] sm:$0xf]
    %v45 = vld [vmem:[%s1 + $0x38] sm:$0xf]
    %v46 = vld [vmem:[%s1 + $0x3c] sm:$0xf]
    %v47 = vld [vmem:[%s1 + $0x40] sm:$0xf]
    %v48 = vld [vmem:[%s1 + $0x44] sm:$0xf]
    %v49 = vld [vmem:[%s1 + $0x48] sm:$0xf]
    %v50 = vld [vmem:[%s1 + $0x4c] sm:$0xf]
    %v51 = vld [vmem:[%s1 + $0x50] sm:$0xf]
    %v52 = vld [vmem:[%s1 + $0x54] sm:$0xf]
    %v53 = vld [vmem:[%s1 + $0x58] sm:$0xf]
    %v54 = vld [vmem:[%s1 + $0x5c] sm:$0xf]
    %v55 = vld [vmem:[%s1 + $0x60] sm:$0xf]
    %v56 = vld [vmem:[%s1 + $0x64] sm:$0xf]
    %v57 = vld [vmem:[%s1 + $0x68] sm:$0xf]
    %v58 = vld [vmem:[%s1 + $0x6c] sm:$0xf]
    %v59 = vld [vmem:[%s1 + $0x70] sm:$0xf]
    %v60 = vld [vmem:[%s1 + $0x74] sm:$0xf]
    %v61 = vld [vmem:[%s1 + $0x78] sm:$0xf]
    %v62 = vld [vmem:[%s1 + $0x7c] sm:$0xf]
    %v63 = vunpack.c.l.bf16 %v31
    %v64 = vunpack.c.l.bf16 %v32
    %v65 = vunpack.c.l.bf16 %v33
    %v66 = vunpack.c.l.bf16 %v34
    %v67 = vunpack.c.l.bf16 %v35
    %v68 = vunpack.c.l.bf16 %v36
    %v69 = vunpack.c.l.bf16 %v37
    %v70 = vunpack.c.l.bf16 %v38
    %v71 = vunpack.c.l.bf16 %v39
    %v72 = vunpack.c.l.bf16 %v40
    %v73 = vunpack.c.l.bf16 %v41
    %v74 = vunpack.c.l.bf16 %v42
    %v75 = vunpack.c.l.bf16 %v43
    %v76 = vunpack.c.l.bf16 %v44
    %v77 = vunpack.c.l.bf16 %v45
    %v78 = vunpack.c.l.bf16 %v46
    %v79 = vunpack.c.l.bf16 %v47
    %v80 = vunpack.c.l.bf16 %v48
    %v81 = vunpack.c.l.bf16 %v49
    %v82 = vunpack.c.l.bf16 %v50
    %v83 = vunpack.c.l.bf16 %v51
    %v84 = vunpack.c.l.bf16 %v52
    %v85 = vunpack.c.l.bf16 %v53
    %v86 = vunpack.c.l.bf16 %v54
    %v87 = vunpack.c.l.bf16 %v55
    %v88 = vunpack.c.l.bf16 %v56
    %v89 = vunpack.c.l.bf16 %v57
    %v90 = vunpack.c.l.bf16 %v58
    %v91 = vunpack.c.l.bf16 %v59
    %v92 = vunpack.c.l.bf16 %v60
    %v93 = vunpack.c.l.bf16 %v61
    %v94 = vunpack.c.l.bf16 %v62
    %96 = vset.pattern.permute.xlu0 0
    %97 = vperm.xlu0 %96, %v63
    %v98 = vpop.permute.xlu0 %97
    %101 = vset.pattern.permute.xlu0 0
    %102 = vperm.xlu0 %101, %v64
    %v103 = vpop.permute.xlu0 %102
    %106 = vset.pattern.permute.xlu0 0
    %107 = vperm.xlu0 %106, %v65
    %v108 = vpop.permute.xlu0 %107
    %111 = vset.pattern.permute.xlu0 0
    %112 = vperm.xlu0 %111, %v66
    %v113 = vpop.permute.xlu0 %112
    %116 = vset.pattern.permute.xlu0 0
    %117 = vperm.xlu0 %116, %v67
    %v118 = vpop.permute.xlu0 %117
    %121 = vset.pattern.permute.xlu0 0
    %122 = vperm.xlu0 %121, %v68
    %v123 = vpop.permute.xlu0 %122
    %126 = vset.pattern.permute.xlu0 0
    %127 = vperm.xlu0 %126, %v69
    %v128 = vpop.permute.xlu0 %127
    %131 = vset.pattern.permute.xlu0 0
    %132 = vperm.xlu0 %131, %v70
    %v133 = vpop.permute.xlu0 %132
    %136 = vset.pattern.permute.xlu0 0
    %137 = vperm.xlu0 %136, %v71
    %v138 = vpop.permute.xlu0 %137
    %141 = vset.pattern.permute.xlu0 0
    %142 = vperm.xlu0 %141, %v72
    %v143 = vpop.permute.xlu0 %142
    %146 = vset.pattern.permute.xlu0 0
    %147 = vperm.xlu0 %146, %v73
    %v148 = vpop.permute.xlu0 %147
    %151 = vset.pattern.permute.xlu0 0
    %152 = vperm.xlu0 %151, %v74
    %v153 = vpop.permute.xlu0 %152
    %156 = vset.pattern.permute.xlu0 0
    %157 = vperm.xlu0 %156, %v75
    %v158 = vpop.permute.xlu0 %157
    %161 = vset.pattern.permute.xlu0 0
    %162 = vperm.xlu0 %161, %v76
    %v163 = vpop.permute.xlu0 %162
    %166 = vset.pattern.permute.xlu0 0
    %167 = vperm.xlu0 %166, %v77
    %v168 = vpop.permute.xlu0 %167
    %171 = vset.pattern.permute.xlu0 0
    %172 = vperm.xlu0 %171, %v78
    %v173 = vpop.permute.xlu0 %172
    %176 = vset.pattern.permute.xlu0 0
    %177 = vperm.xlu0 %176, %v79
    %v178 = vpop.permute.xlu0 %177
    %181 = vset.pattern.permute.xlu0 0
    %182 = vperm.xlu0 %181, %v80
    %v183 = vpop.permute.xlu0 %182
    %186 = vset.pattern.permute.xlu0 0
    %187 = vperm.xlu0 %186, %v81
    %v188 = vpop.permute.xlu0 %187
    %191 = vset.pattern.permute.xlu0 0
    %192 = vperm.xlu0 %191, %v82
    %v193 = vpop.permute.xlu0 %192
    %196 = vset.pattern.permute.xlu0 0
    %197 = vperm.xlu0 %196, %v83
    %v198 = vpop.permute.xlu0 %197
    %201 = vset.pattern.permute.xlu0 0
    %202 = vperm.xlu0 %201, %v84
    %v203 = vpop.permute.xlu0 %202
    %206 = vset.pattern.permute.xlu0 0
    %207 = vperm.xlu0 %206, %v85
    %v208 = vpop.permute.xlu0 %207
    %211 = vset.pattern.permute.xlu0 0
    %212 = vperm.xlu0 %211, %v86
    %v213 = vpop.permute.xlu0 %212
    %216 = vset.pattern.permute.xlu0 0
    %217 = vperm.xlu0 %216, %v87
    %v218 = vpop.permute.xlu0 %217
    %221 = vset.pattern.permute.xlu0 0
    %222 = vperm.xlu0 %221, %v88
    %v223 = vpop.permute.xlu0 %222
    %226 = vset.pattern.permute.xlu0 0
    %227 = vperm.xlu0 %226, %v89
    %v228 = vpop.permute.xlu0 %227
    %231 = vset.pattern.permute.xlu0 0
    %232 = vperm.xlu0 %231, %v90
    %v233 = vpop.permute.xlu0 %232
    %236 = vset.pattern.permute.xlu0 0
    %237 = vperm.xlu0 %236, %v91
    %v238 = vpop.permute.xlu0 %237
    %241 = vset.pattern.permute.xlu0 0
    %242 = vperm.xlu0 %241, %v92
    %v243 = vpop.permute.xlu0 %242
    %246 = vset.pattern.permute.xlu0 0
    %247 = vperm.xlu0 %246, %v93
    %v248 = vpop.permute.xlu0 %247
    %251 = vset.pattern.permute.xlu0 0
    %252 = vperm.xlu0 %251, %v94
    %v253 = vpop.permute.xlu0 %252
    %v255 = vlaneseq
    %v256 = vshrl.u32 %v255, 7
    %v257 = vsub.s32 0, %v256
    %v258 = vrot.slane %v30, %v257
    %v259 = vmul.f32 %v98, %v258
    %v260 = vmul.f32 %v103, %v258
    %v261 = vmul.f32 %v108, %v258
    %v262 = vmul.f32 %v113, %v258
    %v263 = vmul.f32 %v118, %v258
    %v264 = vmul.f32 %v123, %v258
    %v265 = vmul.f32 %v128, %v258
    %v266 = vmul.f32 %v133, %v258
    %v267 = vmul.f32 %v138, %v258
    %v268 = vmul.f32 %v143, %v258
    %v269 = vmul.f32 %v148, %v258
    %v270 = vmul.f32 %v153, %v258
    %v271 = vmul.f32 %v158, %v258
    %v272 = vmul.f32 %v163, %v258
    %v273 = vmul.f32 %v168, %v258
    %v274 = vmul.f32 %v173, %v258
    %v275 = vmul.f32 %v178, %v258
    %v276 = vmul.f32 %v183, %v258
    %v277 = vmul.f32 %v188, %v258
    %v278 = vmul.f32 %v193, %v258
    %v279 = vmul.f32 %v198, %v258
    %v280 = vmul.f32 %v203, %v258
    %v281 = vmul.f32 %v208, %v258
    %v282 = vmul.f32 %v213, %v258
    %v283 = vmul.f32 %v218, %v258
    %v284 = vmul.f32 %v223, %v258
    %v285 = vmul.f32 %v228, %v258
    %v286 = vmul.f32 %v233, %v258
    %v287 = vmul.f32 %v238, %v258
    %v288 = vmul.f32 %v243, %v258
    %v289 = vmul.f32 %v248, %v258
    %v290 = vmul.f32 %v253, %v258
    %291 = vset.pattern.permute.xlu0 1
    %292 = vperm.xlu0 %291, %v63
    %v293 = vpop.permute.xlu0 %292
    %295 = vset.pattern.permute.xlu0 1
    %296 = vperm.xlu0 %295, %v64
    %v297 = vpop.permute.xlu0 %296
    %299 = vset.pattern.permute.xlu0 1
    %300 = vperm.xlu0 %299, %v65
    %v301 = vpop.permute.xlu0 %300
    %303 = vset.pattern.permute.xlu0 1
    %304 = vperm.xlu0 %303, %v66
    %v305 = vpop.permute.xlu0 %304
    %307 = vset.pattern.permute.xlu0 1
    %308 = vperm.xlu0 %307, %v67
    %v309 = vpop.permute.xlu0 %308
    %311 = vset.pattern.permute.xlu0 1
    %312 = vperm.xlu0 %311, %v68
    %v313 = vpop.permute.xlu0 %312
    %315 = vset.pattern.permute.xlu0 1
    %316 = vperm.xlu0 %315, %v69
    %v317 = vpop.permute.xlu0 %316
    %319 = vset.pattern.permute.xlu0 1
    %320 = vperm.xlu0 %319, %v70
    %v321 = vpop.permute.xlu0 %320
    %323 = vset.pattern.permute.xlu0 1
    %324 = vperm.xlu0 %323, %v71
    %v325 = vpop.permute.xlu0 %324
    %327 = vset.pattern.permute.xlu0 1
    %328 = vperm.xlu0 %327, %v72
    %v329 = vpop.permute.xlu0 %328
    %331 = vset.pattern.permute.xlu0 1
    %332 = vperm.xlu0 %331, %v73
    %v333 = vpop.permute.xlu0 %332
    %335 = vset.pattern.permute.xlu0 1
    %336 = vperm.xlu0 %335, %v74
    %v337 = vpop.permute.xlu0 %336
    %339 = vset.pattern.permute.xlu0 1
    %340 = vperm.xlu0 %339, %v75
    %v341 = vpop.permute.xlu0 %340
    %343 = vset.pattern.permute.xlu0 1
    %344 = vperm.xlu0 %343, %v76
    %v345 = vpop.permute.xlu0 %344
    %347 = vset.pattern.permute.xlu0 1
    %348 = vperm.xlu0 %347, %v77
    %v349 = vpop.permute.xlu0 %348
    %351 = vset.pattern.permute.xlu0 1
    %352 = vperm.xlu0 %351, %v78
    %v353 = vpop.permute.xlu0 %352
    %355 = vset.pattern.permute.xlu0 1
    %356 = vperm.xlu0 %355, %v79
    %v357 = vpop.permute.xlu0 %356
    %359 = vset.pattern.permute.xlu0 1
    %360 = vperm.xlu0 %359, %v80
    %v361 = vpop.permute.xlu0 %360
    %363 = vset.pattern.permute.xlu0 1
    %364 = vperm.xlu0 %363, %v81
    %v365 = vpop.permute.xlu0 %364
    %367 = vset.pattern.permute.xlu0 1
    %368 = vperm.xlu0 %367, %v82
    %v369 = vpop.permute.xlu0 %368
    %371 = vset.pattern.permute.xlu0 1
    %372 = vperm.xlu0 %371, %v83
    %v373 = vpop.permute.xlu0 %372
    %375 = vset.pattern.permute.xlu0 1
    %376 = vperm.xlu0 %375, %v84
    %v377 = vpop.permute.xlu0 %376
    %379 = vset.pattern.permute.xlu0 1
    %380 = vperm.xlu0 %379, %v85
    %v381 = vpop.permute.xlu0 %380
    %383 = vset.pattern.permute.xlu0 1
    %384 = vperm.xlu0 %383, %v86
    %v385 = vpop.permute.xlu0 %384
    %387 = vset.pattern.permute.xlu0 1
    %388 = vperm.xlu0 %387, %v87
    %v389 = vpop.permute.xlu0 %388
    %391 = vset.pattern.permute.xlu0 1
    %392 = vperm.xlu0 %391, %v88
    %v393 = vpop.permute.xlu0 %392
    %395 = vset.pattern.permute.xlu0 1
    %396 = vperm.xlu0 %395, %v89
    %v397 = vpop.permute.xlu0 %396
    %399 = vset.pattern.permute.xlu0 1
    %400 = vperm.xlu0 %399, %v90
    %v401 = vpop.permute.xlu0 %400
    %403 = vset.pattern.permute.xlu0 1
    %404 = vperm.xlu0 %403, %v91
    %v405 = vpop.permute.xlu0 %404
    %407 = vset.pattern.permute.xlu0 1
    %408 = vperm.xlu0 %407, %v92
    %v409 = vpop.permute.xlu0 %408
    %411 = vset.pattern.permute.xlu0 1
    %412 = vperm.xlu0 %411, %v93
    %v413 = vpop.permute.xlu0 %412
    %415 = vset.pattern.permute.xlu0 1
    %416 = vperm.xlu0 %415, %v94
    %v417 = vpop.permute.xlu0 %416
    %v419 = vlaneseq
    %v420 = vshrl.u32 %v419, 7
    %v421 = vsub.s32 1, %v420
    %v422 = vrot.slane %v30, %v421
    %v423 = vmul.f32 %v293, %v422
    %v424 = vmul.f32 %v297, %v422
    %v425 = vmul.f32 %v301, %v422
    %v426 = vmul.f32 %v305, %v422
    %v427 = vmul.f32 %v309, %v422
    %v428 = vmul.f32 %v313, %v422
    %v429 = vmul.f32 %v317, %v422
    %v430 = vmul.f32 %v321, %v422
    %v431 = vmul.f32 %v325, %v422
    %v432 = vmul.f32 %v329, %v422
    %v433 = vmul.f32 %v333, %v422
    %v434 = vmul.f32 %v337, %v422
    %v435 = vmul.f32 %v341, %v422
    %v436 = vmul.f32 %v345, %v422
    %v437 = vmul.f32 %v349, %v422
    %v438 = vmul.f32 %v353, %v422
    %v439 = vmul.f32 %v357, %v422
    %v440 = vmul.f32 %v361, %v422
    %v441 = vmul.f32 %v365, %v422
    %v442 = vmul.f32 %v369, %v422
    %v443 = vmul.f32 %v373, %v422
    %v444 = vmul.f32 %v377, %v422
    %v445 = vmul.f32 %v381, %v422
    %v446 = vmul.f32 %v385, %v422
    %v447 = vmul.f32 %v389, %v422
    %v448 = vmul.f32 %v393, %v422
    %v449 = vmul.f32 %v397, %v422
    %v450 = vmul.f32 %v401, %v422
    %v451 = vmul.f32 %v405, %v422
    %v452 = vmul.f32 %v409, %v422
    %v453 = vmul.f32 %v413, %v422
    %v454 = vmul.f32 %v417, %v422
    %v455 = vadd.f32 %v259, %v423
    %v456 = vadd.f32 %v260, %v424
    %v457 = vadd.f32 %v261, %v425
    %v458 = vadd.f32 %v262, %v426
    %v459 = vadd.f32 %v263, %v427
    %v460 = vadd.f32 %v264, %v428
    %v461 = vadd.f32 %v265, %v429
    %v462 = vadd.f32 %v266, %v430
    %v463 = vadd.f32 %v267, %v431
    %v464 = vadd.f32 %v268, %v432
    %v465 = vadd.f32 %v269, %v433
    %v466 = vadd.f32 %v270, %v434
    %v467 = vadd.f32 %v271, %v435
    %v468 = vadd.f32 %v272, %v436
    %v469 = vadd.f32 %v273, %v437
    %v470 = vadd.f32 %v274, %v438
    %v471 = vadd.f32 %v275, %v439
    %v472 = vadd.f32 %v276, %v440
    %v473 = vadd.f32 %v277, %v441
    %v474 = vadd.f32 %v278, %v442
    %v475 = vadd.f32 %v279, %v443
    %v476 = vadd.f32 %v280, %v444
    %v477 = vadd.f32 %v281, %v445
    %v478 = vadd.f32 %v282, %v446
    %v479 = vadd.f32 %v283, %v447
    %v480 = vadd.f32 %v284, %v448
    %v481 = vadd.f32 %v285, %v449
    %v482 = vadd.f32 %v286, %v450
    %v483 = vadd.f32 %v287, %v451
    %v484 = vadd.f32 %v288, %v452
    %v485 = vadd.f32 %v289, %v453
    %v486 = vadd.f32 %v290, %v454
    %487 = vset.pattern.permute.xlu0 2
    %488 = vperm.xlu0 %487, %v63
    %v489 = vpop.permute.xlu0 %488
    %491 = vset.pattern.permute.xlu0 2
    %492 = vperm.xlu0 %491, %v64
    %v493 = vpop.permute.xlu0 %492
    %495 = vset.pattern.permute.xlu0 2
    %496 = vperm.xlu0 %495, %v65
    %v497 = vpop.permute.xlu0 %496
    %499 = vset.pattern.permute.xlu0 2
    %500 = vperm.xlu0 %499, %v66
    %v501 = vpop.permute.xlu0 %500
    %503 = vset.pattern.permute.xlu0 2
    %504 = vperm.xlu0 %503, %v67
    %v505 = vpop.permute.xlu0 %504
    %507 = vset.pattern.permute.xlu0 2
    %508 = vperm.xlu0 %507, %v68
    %v509 = vpop.permute.xlu0 %508
    %511 = vset.pattern.permute.xlu0 2
    %512 = vperm.xlu0 %511, %v69
    %v513 = vpop.permute.xlu0 %512
    %515 = vset.pattern.permute.xlu0 2
    %516 = vperm.xlu0 %515, %v70
    %v517 = vpop.permute.xlu0 %516
    %519 = vset.pattern.permute.xlu0 2
    %520 = vperm.xlu0 %519, %v71
    %v521 = vpop.permute.xlu0 %520
    %523 = vset.pattern.permute.xlu0 2
    %524 = vperm.xlu0 %523, %v72
    %v525 = vpop.permute.xlu0 %524
    %527 = vset.pattern.permute.xlu0 2
    %528 = vperm.xlu0 %527, %v73
    %v529 = vpop.permute.xlu0 %528
    %531 = vset.pattern.permute.xlu0 2
    %532 = vperm.xlu0 %531, %v74
    %v533 = vpop.permute.xlu0 %532
    %535 = vset.pattern.permute.xlu0 2
    %536 = vperm.xlu0 %535, %v75
    %v537 = vpop.permute.xlu0 %536
    %539 = vset.pattern.permute.xlu0 2
    %540 = vperm.xlu0 %539, %v76
    %v541 = vpop.permute.xlu0 %540
    %543 = vset.pattern.permute.xlu0 2
    %544 = vperm.xlu0 %543, %v77
    %v545 = vpop.permute.xlu0 %544
    %547 = vset.pattern.permute.xlu0 2
    %548 = vperm.xlu0 %547, %v78
    %v549 = vpop.permute.xlu0 %548
    %551 = vset.pattern.permute.xlu0 2
    %552 = vperm.xlu0 %551, %v79
    %v553 = vpop.permute.xlu0 %552
    %555 = vset.pattern.permute.xlu0 2
    %556 = vperm.xlu0 %555, %v80
    %v557 = vpop.permute.xlu0 %556
    %559 = vset.pattern.permute.xlu0 2
    %560 = vperm.xlu0 %559, %v81
    %v561 = vpop.permute.xlu0 %560
    %563 = vset.pattern.permute.xlu0 2
    %564 = vperm.xlu0 %563, %v82
    %v565 = vpop.permute.xlu0 %564
    %567 = vset.pattern.permute.xlu0 2
    %568 = vperm.xlu0 %567, %v83
    %v569 = vpop.permute.xlu0 %568
    %571 = vset.pattern.permute.xlu0 2
    %572 = vperm.xlu0 %571, %v84
    %v573 = vpop.permute.xlu0 %572
    %575 = vset.pattern.permute.xlu0 2
    %576 = vperm.xlu0 %575, %v85
    %v577 = vpop.permute.xlu0 %576
    %579 = vset.pattern.permute.xlu0 2
    %580 = vperm.xlu0 %579, %v86
    %v581 = vpop.permute.xlu0 %580
    %583 = vset.pattern.permute.xlu0 2
    %584 = vperm.xlu0 %583, %v87
    %v585 = vpop.permute.xlu0 %584
    %587 = vset.pattern.permute.xlu0 2
    %588 = vperm.xlu0 %587, %v88
    %v589 = vpop.permute.xlu0 %588
    %591 = vset.pattern.permute.xlu0 2
    %592 = vperm.xlu0 %591, %v89
    %v593 = vpop.permute.xlu0 %592
    %595 = vset.pattern.permute.xlu0 2
    %596 = vperm.xlu0 %595, %v90
    %v597 = vpop.permute.xlu0 %596
    %599 = vset.pattern.permute.xlu0 2
    %600 = vperm.xlu0 %599, %v91
    %v601 = vpop.permute.xlu0 %600
    %603 = vset.pattern.permute.xlu0 2
    %604 = vperm.xlu0 %603, %v92
    %v605 = vpop.permute.xlu0 %604
    %607 = vset.pattern.permute.xlu0 2
    %608 = vperm.xlu0 %607, %v93
    %v609 = vpop.permute.xlu0 %608
    %611 = vset.pattern.permute.xlu0 2
    %612 = vperm.xlu0 %611, %v94
    %v613 = vpop.permute.xlu0 %612
    %v615 = vlaneseq
    %v616 = vshrl.u32 %v615, 7
    %v617 = vsub.s32 2, %v616
    %v618 = vrot.slane %v30, %v617
    %v619 = vmul.f32 %v489, %v618
    %v620 = vmul.f32 %v493, %v618
    %v621 = vmul.f32 %v497, %v618
    %v622 = vmul.f32 %v501, %v618
    %v623 = vmul.f32 %v505, %v618
    %v624 = vmul.f32 %v509, %v618
    %v625 = vmul.f32 %v513, %v618
    %v626 = vmul.f32 %v517, %v618
    %v627 = vmul.f32 %v521, %v618
    %v628 = vmul.f32 %v525, %v618
    %v629 = vmul.f32 %v529, %v618
    %v630 = vmul.f32 %v533, %v618
    %v631 = vmul.f32 %v537, %v618
    %v632 = vmul.f32 %v541, %v618
    %v633 = vmul.f32 %v545, %v618
    %v634 = vmul.f32 %v549, %v618
    %v635 = vmul.f32 %v553, %v618
    %v636 = vmul.f32 %v557, %v618
    %v637 = vmul.f32 %v561, %v618
    %v638 = vmul.f32 %v565, %v618
    %v639 = vmul.f32 %v569, %v618
    %v640 = vmul.f32 %v573, %v618
    %v641 = vmul.f32 %v577, %v618
    %v642 = vmul.f32 %v581, %v618
    %v643 = vmul.f32 %v585, %v618
    %v644 = vmul.f32 %v589, %v618
    %v645 = vmul.f32 %v593, %v618
    %v646 = vmul.f32 %v597, %v618
    %v647 = vmul.f32 %v601, %v618
    %v648 = vmul.f32 %v605, %v618
    %v649 = vmul.f32 %v609, %v618
    %v650 = vmul.f32 %v613, %v618
    %v651 = vadd.f32 %v455, %v619
    %v652 = vadd.f32 %v456, %v620
    %v653 = vadd.f32 %v457, %v621
    %v654 = vadd.f32 %v458, %v622
    %v655 = vadd.f32 %v459, %v623
    %v656 = vadd.f32 %v460, %v624
    %v657 = vadd.f32 %v461, %v625
    %v658 = vadd.f32 %v462, %v626
    %v659 = vadd.f32 %v463, %v627
    %v660 = vadd.f32 %v464, %v628
    %v661 = vadd.f32 %v465, %v629
    %v662 = vadd.f32 %v466, %v630
    %v663 = vadd.f32 %v467, %v631
    %v664 = vadd.f32 %v468, %v632
    %v665 = vadd.f32 %v469, %v633
    %v666 = vadd.f32 %v470, %v634
    %v667 = vadd.f32 %v471, %v635
    %v668 = vadd.f32 %v472, %v636
    %v669 = vadd.f32 %v473, %v637
    %v670 = vadd.f32 %v474, %v638
    %v671 = vadd.f32 %v475, %v639
    %v672 = vadd.f32 %v476, %v640
    %v673 = vadd.f32 %v477, %v641
    %v674 = vadd.f32 %v478, %v642
    %v675 = vadd.f32 %v479, %v643
    %v676 = vadd.f32 %v480, %v644
    %v677 = vadd.f32 %v481, %v645
    %v678 = vadd.f32 %v482, %v646
    %v679 = vadd.f32 %v483, %v647
    %v680 = vadd.f32 %v484, %v648
    %v681 = vadd.f32 %v485, %v649
    %v682 = vadd.f32 %v486, %v650
    %683 = vset.pattern.permute.xlu0 3
    %684 = vperm.xlu0 %683, %v63
    %v685 = vpop.permute.xlu0 %684
    %687 = vset.pattern.permute.xlu0 3
    %688 = vperm.xlu0 %687, %v64
    %v689 = vpop.permute.xlu0 %688
    %691 = vset.pattern.permute.xlu0 3
    %692 = vperm.xlu0 %691, %v65
    %v693 = vpop.permute.xlu0 %692
    %695 = vset.pattern.permute.xlu0 3
    %696 = vperm.xlu0 %695, %v66
    %v697 = vpop.permute.xlu0 %696
    %699 = vset.pattern.permute.xlu0 3
    %700 = vperm.xlu0 %699, %v67
    %v701 = vpop.permute.xlu0 %700
    %703 = vset.pattern.permute.xlu0 3
    %704 = vperm.xlu0 %703, %v68
    %v705 = vpop.permute.xlu0 %704
    %707 = vset.pattern.permute.xlu0 3
    %708 = vperm.xlu0 %707, %v69
    %v709 = vpop.permute.xlu0 %708
    %711 = vset.pattern.permute.xlu0 3
    %712 = vperm.xlu0 %711, %v70
    %v713 = vpop.permute.xlu0 %712
    %715 = vset.pattern.permute.xlu0 3
    %716 = vperm.xlu0 %715, %v71
    %v717 = vpop.permute.xlu0 %716
    %719 = vset.pattern.permute.xlu0 3
    %720 = vperm.xlu0 %719, %v72
    %v721 = vpop.permute.xlu0 %720
    %723 = vset.pattern.permute.xlu0 3
    %724 = vperm.xlu0 %723, %v73
    %v725 = vpop.permute.xlu0 %724
    %727 = vset.pattern.permute.xlu0 3
    %728 = vperm.xlu0 %727, %v74
    %v729 = vpop.permute.xlu0 %728
    %731 = vset.pattern.permute.xlu0 3
    %732 = vperm.xlu0 %731, %v75
    %v733 = vpop.permute.xlu0 %732
    %735 = vset.pattern.permute.xlu0 3
    %736 = vperm.xlu0 %735, %v76
    %v737 = vpop.permute.xlu0 %736
    %739 = vset.pattern.permute.xlu0 3
    %740 = vperm.xlu0 %739, %v77
    %v741 = vpop.permute.xlu0 %740
    %743 = vset.pattern.permute.xlu0 3
    %744 = vperm.xlu0 %743, %v78
    %v745 = vpop.permute.xlu0 %744
    %747 = vset.pattern.permute.xlu0 3
    %748 = vperm.xlu0 %747, %v79
    %v749 = vpop.permute.xlu0 %748
    %751 = vset.pattern.permute.xlu0 3
    %752 = vperm.xlu0 %751, %v80
    %v753 = vpop.permute.xlu0 %752
    %755 = vset.pattern.permute.xlu0 3
    %756 = vperm.xlu0 %755, %v81
    %v757 = vpop.permute.xlu0 %756
    %759 = vset.pattern.permute.xlu0 3
    %760 = vperm.xlu0 %759, %v82
    %v761 = vpop.permute.xlu0 %760
    %763 = vset.pattern.permute.xlu0 3
    %764 = vperm.xlu0 %763, %v83
    %v765 = vpop.permute.xlu0 %764
    %767 = vset.pattern.permute.xlu0 3
    %768 = vperm.xlu0 %767, %v84
    %v769 = vpop.permute.xlu0 %768
    %771 = vset.pattern.permute.xlu0 3
    %772 = vperm.xlu0 %771, %v85
    %v773 = vpop.permute.xlu0 %772
    %775 = vset.pattern.permute.xlu0 3
    %776 = vperm.xlu0 %775, %v86
    %v777 = vpop.permute.xlu0 %776
    %779 = vset.pattern.permute.xlu0 3
    %780 = vperm.xlu0 %779, %v87
    %v781 = vpop.permute.xlu0 %780
    %783 = vset.pattern.permute.xlu0 3
    %784 = vperm.xlu0 %783, %v88
    %v785 = vpop.permute.xlu0 %784
    %787 = vset.pattern.permute.xlu0 3
    %788 = vperm.xlu0 %787, %v89
    %v789 = vpop.permute.xlu0 %788
    %791 = vset.pattern.permute.xlu0 3
    %792 = vperm.xlu0 %791, %v90
    %v793 = vpop.permute.xlu0 %792
    %795 = vset.pattern.permute.xlu0 3
    %796 = vperm.xlu0 %795, %v91
    %v797 = vpop.permute.xlu0 %796
    %799 = vset.pattern.permute.xlu0 3
    %800 = vperm.xlu0 %799, %v92
    %v801 = vpop.permute.xlu0 %800
    %803 = vset.pattern.permute.xlu0 3
    %804 = vperm.xlu0 %803, %v93
    %v805 = vpop.permute.xlu0 %804
    %807 = vset.pattern.permute.xlu0 3
    %808 = vperm.xlu0 %807, %v94
    %v809 = vpop.permute.xlu0 %808
    %v811 = vlaneseq
    %v812 = vshrl.u32 %v811, 7
    %v813 = vsub.s32 3, %v812
    %v814 = vrot.slane %v30, %v813
    %v815 = vmul.f32 %v685, %v814
    %v816 = vmul.f32 %v689, %v814
    %v817 = vmul.f32 %v693, %v814
    %v818 = vmul.f32 %v697, %v814
    %v819 = vmul.f32 %v701, %v814
    %v820 = vmul.f32 %v705, %v814
    %v821 = vmul.f32 %v709, %v814
    %v822 = vmul.f32 %v713, %v814
    %v823 = vmul.f32 %v717, %v814
    %v824 = vmul.f32 %v721, %v814
    %v825 = vmul.f32 %v725, %v814
    %v826 = vmul.f32 %v729, %v814
    %v827 = vmul.f32 %v733, %v814
    %v828 = vmul.f32 %v737, %v814
    %v829 = vmul.f32 %v741, %v814
    %v830 = vmul.f32 %v745, %v814
    %v831 = vmul.f32 %v749, %v814
    %v832 = vmul.f32 %v753, %v814
    %v833 = vmul.f32 %v757, %v814
    %v834 = vmul.f32 %v761, %v814
    %v835 = vmul.f32 %v765, %v814
    %v836 = vmul.f32 %v769, %v814
    %v837 = vmul.f32 %v773, %v814
    %v838 = vmul.f32 %v777, %v814
    %v839 = vmul.f32 %v781, %v814
    %v840 = vmul.f32 %v785, %v814
    %v841 = vmul.f32 %v789, %v814
    %v842 = vmul.f32 %v793, %v814
    %v843 = vmul.f32 %v797, %v814
    %v844 = vmul.f32 %v801, %v814
    %v845 = vmul.f32 %v805, %v814
    %v846 = vmul.f32 %v809, %v814
    %v847 = vadd.f32 %v651, %v815
    %v848 = vadd.f32 %v652, %v816
    %v849 = vadd.f32 %v653, %v817
    %v850 = vadd.f32 %v654, %v818
    %v851 = vadd.f32 %v655, %v819
    %v852 = vadd.f32 %v656, %v820
    %v853 = vadd.f32 %v657, %v821
    %v854 = vadd.f32 %v658, %v822
    %v855 = vadd.f32 %v659, %v823
    %v856 = vadd.f32 %v660, %v824
    %v857 = vadd.f32 %v661, %v825
    %v858 = vadd.f32 %v662, %v826
    %v859 = vadd.f32 %v663, %v827
    %v860 = vadd.f32 %v664, %v828
    %v861 = vadd.f32 %v665, %v829
    %v862 = vadd.f32 %v666, %v830
    %v863 = vadd.f32 %v667, %v831
    %v864 = vadd.f32 %v668, %v832
    %v865 = vadd.f32 %v669, %v833
    %v866 = vadd.f32 %v670, %v834
    %v867 = vadd.f32 %v671, %v835
    %v868 = vadd.f32 %v672, %v836
    %v869 = vadd.f32 %v673, %v837
    %v870 = vadd.f32 %v674, %v838
    %v871 = vadd.f32 %v675, %v839
    %v872 = vadd.f32 %v676, %v840
    %v873 = vadd.f32 %v677, %v841
    %v874 = vadd.f32 %v678, %v842
    %v875 = vadd.f32 %v679, %v843
    %v876 = vadd.f32 %v680, %v844
    %v877 = vadd.f32 %v681, %v845
    %v878 = vadd.f32 %v682, %v846
    %v879 = vld [vmem:[%s2] sm:$0xff]
    %v880 = vld [vmem:[%s2 + $0x8] sm:$0xff]
    %v881 = vld [vmem:[%s2 + $0x10] sm:$0xff]
    %v882 = vld [vmem:[%s2 + $0x18] sm:$0xff]
    %v883 = vld [vmem:[%s2 + $0x20] sm:$0xff]
    %v884 = vld [vmem:[%s2 + $0x28] sm:$0xff]
    %v885 = vld [vmem:[%s2 + $0x30] sm:$0xff]
    %v886 = vld [vmem:[%s2 + $0x38] sm:$0xff]
    %v887 = vld [vmem:[%s2 + $0x40] sm:$0xff]
    %v888 = vld [vmem:[%s2 + $0x48] sm:$0xff]
    %v889 = vld [vmem:[%s2 + $0x50] sm:$0xff]
    %v890 = vld [vmem:[%s2 + $0x58] sm:$0xff]
    %v891 = vld [vmem:[%s2 + $0x60] sm:$0xff]
    %v892 = vld [vmem:[%s2 + $0x68] sm:$0xff]
    %v893 = vld [vmem:[%s2 + $0x70] sm:$0xff]
    %v894 = vld [vmem:[%s2 + $0x78] sm:$0xff]
    %v895 = vld [vmem:[%s2 + $0x80] sm:$0xff]
    %v896 = vld [vmem:[%s2 + $0x88] sm:$0xff]
    %v897 = vld [vmem:[%s2 + $0x90] sm:$0xff]
    %v898 = vld [vmem:[%s2 + $0x98] sm:$0xff]
    %v899 = vld [vmem:[%s2 + $0xa0] sm:$0xff]
    %v900 = vld [vmem:[%s2 + $0xa8] sm:$0xff]
    %v901 = vld [vmem:[%s2 + $0xb0] sm:$0xff]
    %v902 = vld [vmem:[%s2 + $0xb8] sm:$0xff]
    %v903 = vld [vmem:[%s2 + $0xc0] sm:$0xff]
    %v904 = vld [vmem:[%s2 + $0xc8] sm:$0xff]
    %v905 = vld [vmem:[%s2 + $0xd0] sm:$0xff]
    %v906 = vld [vmem:[%s2 + $0xd8] sm:$0xff]
    %v907 = vld [vmem:[%s2 + $0xe0] sm:$0xff]
    %v908 = vld [vmem:[%s2 + $0xe8] sm:$0xff]
    %v909 = vld [vmem:[%s2 + $0xf0] sm:$0xff]
    %v910 = vld [vmem:[%s2 + $0xf8] sm:$0xff]
    %912 = vset.pattern.permute.xlu0 0
    %913 = vperm.xlu0 %912, %v879
    %v914 = vpop.permute.xlu0 %913
    %917 = vset.pattern.permute.xlu0 0
    %918 = vperm.xlu0 %917, %v880
    %v919 = vpop.permute.xlu0 %918
    %922 = vset.pattern.permute.xlu0 0
    %923 = vperm.xlu0 %922, %v881
    %v924 = vpop.permute.xlu0 %923
    %927 = vset.pattern.permute.xlu0 0
    %928 = vperm.xlu0 %927, %v882
    %v929 = vpop.permute.xlu0 %928
    %932 = vset.pattern.permute.xlu0 0
    %933 = vperm.xlu0 %932, %v883
    %v934 = vpop.permute.xlu0 %933
    %937 = vset.pattern.permute.xlu0 0
    %938 = vperm.xlu0 %937, %v884
    %v939 = vpop.permute.xlu0 %938
    %942 = vset.pattern.permute.xlu0 0
    %943 = vperm.xlu0 %942, %v885
    %v944 = vpop.permute.xlu0 %943
    %947 = vset.pattern.permute.xlu0 0
    %948 = vperm.xlu0 %947, %v886
    %v949 = vpop.permute.xlu0 %948
    %952 = vset.pattern.permute.xlu0 0
    %953 = vperm.xlu0 %952, %v887
    %v954 = vpop.permute.xlu0 %953
    %957 = vset.pattern.permute.xlu0 0
    %958 = vperm.xlu0 %957, %v888
    %v959 = vpop.permute.xlu0 %958
    %962 = vset.pattern.permute.xlu0 0
    %963 = vperm.xlu0 %962, %v889
    %v964 = vpop.permute.xlu0 %963
    %967 = vset.pattern.permute.xlu0 0
    %968 = vperm.xlu0 %967, %v890
    %v969 = vpop.permute.xlu0 %968
    %972 = vset.pattern.permute.xlu0 0
    %973 = vperm.xlu0 %972, %v891
    %v974 = vpop.permute.xlu0 %973
    %977 = vset.pattern.permute.xlu0 0
    %978 = vperm.xlu0 %977, %v892
    %v979 = vpop.permute.xlu0 %978
    %982 = vset.pattern.permute.xlu0 0
    %983 = vperm.xlu0 %982, %v893
    %v984 = vpop.permute.xlu0 %983
    %987 = vset.pattern.permute.xlu0 0
    %988 = vperm.xlu0 %987, %v894
    %v989 = vpop.permute.xlu0 %988
    %992 = vset.pattern.permute.xlu0 0
    %993 = vperm.xlu0 %992, %v895
    %v994 = vpop.permute.xlu0 %993
    %997 = vset.pattern.permute.xlu0 0
    %998 = vperm.xlu0 %997, %v896
    %v999 = vpop.permute.xlu0 %998
    %1002 = vset.pattern.permute.xlu0 0
    %1003 = vperm.xlu0 %1002, %v897
    %v1004 = vpop.permute.xlu0 %1003
    %1007 = vset.pattern.permute.xlu0 0
    %1008 = vperm.xlu0 %1007, %v898
    %v1009 = vpop.permute.xlu0 %1008
    %1012 = vset.pattern.permute.xlu0 0
    %1013 = vperm.xlu0 %1012, %v899
    %v1014 = vpop.permute.xlu0 %1013
    %1017 = vset.pattern.permute.xlu0 0
    %1018 = vperm.xlu0 %1017, %v900
    %v1019 = vpop.permute.xlu0 %1018
    %1022 = vset.pattern.permute.xlu0 0
    %1023 = vperm.xlu0 %1022, %v901
    %v1024 = vpop.permute.xlu0 %1023
    %1027 = vset.pattern.permute.xlu0 0
    %1028 = vperm.xlu0 %1027, %v902
    %v1029 = vpop.permute.xlu0 %1028
    %1032 = vset.pattern.permute.xlu0 0
    %1033 = vperm.xlu0 %1032, %v903
    %v1034 = vpop.permute.xlu0 %1033
    %1037 = vset.pattern.permute.xlu0 0
    %1038 = vperm.xlu0 %1037, %v904
    %v1039 = vpop.permute.xlu0 %1038
    %1042 = vset.pattern.permute.xlu0 0
    %1043 = vperm.xlu0 %1042, %v905
    %v1044 = vpop.permute.xlu0 %1043
    %1047 = vset.pattern.permute.xlu0 0
    %1048 = vperm.xlu0 %1047, %v906
    %v1049 = vpop.permute.xlu0 %1048
    %1052 = vset.pattern.permute.xlu0 0
    %1053 = vperm.xlu0 %1052, %v907
    %v1054 = vpop.permute.xlu0 %1053
    %1057 = vset.pattern.permute.xlu0 0
    %1058 = vperm.xlu0 %1057, %v908
    %v1059 = vpop.permute.xlu0 %1058
    %1062 = vset.pattern.permute.xlu0 0
    %1063 = vperm.xlu0 %1062, %v909
    %v1064 = vpop.permute.xlu0 %1063
    %1067 = vset.pattern.permute.xlu0 0
    %1068 = vperm.xlu0 %1067, %v910
    %v1069 = vpop.permute.xlu0 %1068
    %v1071 = vadd.f32 %v847, %v914
    %v1072 = vadd.f32 %v848, %v919
    %v1073 = vadd.f32 %v849, %v924
    %v1074 = vadd.f32 %v850, %v929
    %v1075 = vadd.f32 %v851, %v934
    %v1076 = vadd.f32 %v852, %v939
    %v1077 = vadd.f32 %v853, %v944
    %v1078 = vadd.f32 %v854, %v949
    %v1079 = vadd.f32 %v855, %v954
    %v1080 = vadd.f32 %v856, %v959
    %v1081 = vadd.f32 %v857, %v964
    %v1082 = vadd.f32 %v858, %v969
    %v1083 = vadd.f32 %v859, %v974
    %v1084 = vadd.f32 %v860, %v979
    %v1085 = vadd.f32 %v861, %v984
    %v1086 = vadd.f32 %v862, %v989
    %v1087 = vadd.f32 %v863, %v994
    %v1088 = vadd.f32 %v864, %v999
    %v1089 = vadd.f32 %v865, %v1004
    %v1090 = vadd.f32 %v866, %v1009
    %v1091 = vadd.f32 %v867, %v1014
    %v1092 = vadd.f32 %v868, %v1019
    %v1093 = vadd.f32 %v869, %v1024
    %v1094 = vadd.f32 %v870, %v1029
    %v1095 = vadd.f32 %v871, %v1034
    %v1096 = vadd.f32 %v872, %v1039
    %v1097 = vadd.f32 %v873, %v1044
    %v1098 = vadd.f32 %v874, %v1049
    %v1099 = vadd.f32 %v875, %v1054
    %v1100 = vadd.f32 %v876, %v1059
    %v1101 = vadd.f32 %v877, %v1064
    %v1102 = vadd.f32 %v878, %v1069
    %v1103 = vmax.f32 %v1071, 0.0
    %v1104 = vmax.f32 %v1072, 0.0
    %v1105 = vmax.f32 %v1073, 0.0
    %v1106 = vmax.f32 %v1074, 0.0
    %v1107 = vmax.f32 %v1075, 0.0
    %v1108 = vmax.f32 %v1076, 0.0
    %v1109 = vmax.f32 %v1077, 0.0
    %v1110 = vmax.f32 %v1078, 0.0
    %v1111 = vmax.f32 %v1079, 0.0
    %v1112 = vmax.f32 %v1080, 0.0
    %v1113 = vmax.f32 %v1081, 0.0
    %v1114 = vmax.f32 %v1082, 0.0
    %v1115 = vmax.f32 %v1083, 0.0
    %v1116 = vmax.f32 %v1084, 0.0
    %v1117 = vmax.f32 %v1085, 0.0
    %v1118 = vmax.f32 %v1086, 0.0
    %v1119 = vmax.f32 %v1087, 0.0
    %v1120 = vmax.f32 %v1088, 0.0
    %v1121 = vmax.f32 %v1089, 0.0
    %v1122 = vmax.f32 %v1090, 0.0
    %v1123 = vmax.f32 %v1091, 0.0
    %v1124 = vmax.f32 %v1092, 0.0
    %v1125 = vmax.f32 %v1093, 0.0
    %v1126 = vmax.f32 %v1094, 0.0
    %v1127 = vmax.f32 %v1095, 0.0
    %v1128 = vmax.f32 %v1096, 0.0
    %v1129 = vmax.f32 %v1097, 0.0
    %v1130 = vmax.f32 %v1098, 0.0
    %v1131 = vmax.f32 %v1099, 0.0
    %v1132 = vmax.f32 %v1100, 0.0
    %v1133 = vmax.f32 %v1101, 0.0
    %v1134 = vmax.f32 %v1102, 0.0
    %v1135 = vld [vmem:[%s3] sm:$0xff]
    %v1136 = vld [vmem:[%s3 + $0x8] sm:$0xff]
    %v1137 = vld [vmem:[%s3 + $0x10] sm:$0xff]
    %v1138 = vld [vmem:[%s3 + $0x18] sm:$0xff]
    %v1139 = vld [vmem:[%s3 + $0x20] sm:$0xff]
    %v1140 = vld [vmem:[%s3 + $0x28] sm:$0xff]
    %v1141 = vld [vmem:[%s3 + $0x30] sm:$0xff]
    %v1142 = vld [vmem:[%s3 + $0x38] sm:$0xff]
    %v1143 = vld [vmem:[%s3 + $0x40] sm:$0xff]
    %v1144 = vld [vmem:[%s3 + $0x48] sm:$0xff]
    %v1145 = vld [vmem:[%s3 + $0x50] sm:$0xff]
    %v1146 = vld [vmem:[%s3 + $0x58] sm:$0xff]
    %v1147 = vld [vmem:[%s3 + $0x60] sm:$0xff]
    %v1148 = vld [vmem:[%s3 + $0x68] sm:$0xff]
    %v1149 = vld [vmem:[%s3 + $0x70] sm:$0xff]
    %v1150 = vld [vmem:[%s3 + $0x78] sm:$0xff]
    %v1151 = vld [vmem:[%s3 + $0x80] sm:$0xff]
    %v1152 = vld [vmem:[%s3 + $0x88] sm:$0xff]
    %v1153 = vld [vmem:[%s3 + $0x90] sm:$0xff]
    %v1154 = vld [vmem:[%s3 + $0x98] sm:$0xff]
    %v1155 = vld [vmem:[%s3 + $0xa0] sm:$0xff]
    %v1156 = vld [vmem:[%s3 + $0xa8] sm:$0xff]
    %v1157 = vld [vmem:[%s3 + $0xb0] sm:$0xff]
    %v1158 = vld [vmem:[%s3 + $0xb8] sm:$0xff]
    %v1159 = vld [vmem:[%s3 + $0xc0] sm:$0xff]
    %v1160 = vld [vmem:[%s3 + $0xc8] sm:$0xff]
    %v1161 = vld [vmem:[%s3 + $0xd0] sm:$0xff]
    %v1162 = vld [vmem:[%s3 + $0xd8] sm:$0xff]
    %v1163 = vld [vmem:[%s3 + $0xe0] sm:$0xff]
    %v1164 = vld [vmem:[%s3 + $0xe8] sm:$0xff]
    %v1165 = vld [vmem:[%s3 + $0xf0] sm:$0xff]
    %v1166 = vld [vmem:[%s3 + $0xf8] sm:$0xff]
    %v1167 = vpack.c.bf16 %v1104, %v1103
    %v1168 = vpack.c.bf16 %v1106, %v1105
    %v1169 = vpack.c.bf16 %v1108, %v1107
    %v1170 = vpack.c.bf16 %v1110, %v1109
    %v1171 = vpack.c.bf16 %v1112, %v1111
    %v1172 = vpack.c.bf16 %v1114, %v1113
    %v1173 = vpack.c.bf16 %v1116, %v1115
    %v1174 = vpack.c.bf16 %v1118, %v1117
    %v1175 = vpack.c.bf16 %v1120, %v1119
    %v1176 = vpack.c.bf16 %v1122, %v1121
    %v1177 = vpack.c.bf16 %v1124, %v1123
    %v1178 = vpack.c.bf16 %v1126, %v1125
    %v1179 = vpack.c.bf16 %v1128, %v1127
    %v1180 = vpack.c.bf16 %v1130, %v1129
    %v1181 = vpack.c.bf16 %v1132, %v1131
    %v1182 = vpack.c.bf16 %v1134, %v1133
    %v1183 = vld [vmem:[%s4] sm:$0xff]
    %v1184 = vld [vmem:[%s4 + $0x8] sm:$0xff]
    %v1185 = vld [vmem:[%s4 + $0x10] sm:$0xff]
    %v1186 = vld [vmem:[%s4 + $0x18] sm:$0xff]
    %v1187 = vld [vmem:[%s4 + $0x20] sm:$0xff]
    %v1188 = vld [vmem:[%s4 + $0x28] sm:$0xff]
    %v1189 = vld [vmem:[%s4 + $0x30] sm:$0xff]
    %v1190 = vld [vmem:[%s4 + $0x38] sm:$0xff]
    %v1191 = vld [vmem:[%s4 + $0x40] sm:$0xff]
    %v1192 = vld [vmem:[%s4 + $0x48] sm:$0xff]
    %v1193 = vld [vmem:[%s4 + $0x50] sm:$0xff]
    %v1194 = vld [vmem:[%s4 + $0x58] sm:$0xff]
    %v1195 = vld [vmem:[%s4 + $0x60] sm:$0xff]
    %v1196 = vld [vmem:[%s4 + $0x68] sm:$0xff]
    %v1197 = vld [vmem:[%s4 + $0x70] sm:$0xff]
    %v1198 = vld [vmem:[%s4 + $0x78] sm:$0xff]
    %v1199 = vld [vmem:[%s4 + $0x80] sm:$0xff]
    %v1200 = vld [vmem:[%s4 + $0x88] sm:$0xff]
    %v1201 = vld [vmem:[%s4 + $0x90] sm:$0xff]
    %v1202 = vld [vmem:[%s4 + $0x98] sm:$0xff]
    %v1203 = vld [vmem:[%s4 + $0xa0] sm:$0xff]
    %v1204 = vld [vmem:[%s4 + $0xa8] sm:$0xff]
    %v1205 = vld [vmem:[%s4 + $0xb0] sm:$0xff]
    %v1206 = vld [vmem:[%s4 + $0xb8] sm:$0xff]
    %v1207 = vld [vmem:[%s4 + $0xc0] sm:$0xff]
    %v1208 = vld [vmem:[%s4 + $0xc8] sm:$0xff]
    %v1209 = vld [vmem:[%s4 + $0xd0] sm:$0xff]
    %v1210 = vld [vmem:[%s4 + $0xd8] sm:$0xff]
    %v1211 = vld [vmem:[%s4 + $0xe0] sm:$0xff]
    %v1212 = vld [vmem:[%s4 + $0xe8] sm:$0xff]
    %v1213 = vld [vmem:[%s4 + $0xf0] sm:$0xff]
    %v1214 = vld [vmem:[%s4 + $0xf8] sm:$0xff]
    %1216 = vset.pattern.permute.xlu0 0
    %1217 = vperm.xlu0 %1216, %v1183
    %v1218 = vpop.permute.xlu0 %1217
    %1221 = vset.pattern.permute.xlu0 0
    %1222 = vperm.xlu0 %1221, %v1184
    %v1223 = vpop.permute.xlu0 %1222
    %1226 = vset.pattern.permute.xlu0 0
    %1227 = vperm.xlu0 %1226, %v1185
    %v1228 = vpop.permute.xlu0 %1227
    %1231 = vset.pattern.permute.xlu0 0
    %1232 = vperm.xlu0 %1231, %v1186
    %v1233 = vpop.permute.xlu0 %1232
    %1236 = vset.pattern.permute.xlu0 0
    %1237 = vperm.xlu0 %1236, %v1187
    %v1238 = vpop.permute.xlu0 %1237
    %1241 = vset.pattern.permute.xlu0 0
    %1242 = vperm.xlu0 %1241, %v1188
    %v1243 = vpop.permute.xlu0 %1242
    %1246 = vset.pattern.permute.xlu0 0
    %1247 = vperm.xlu0 %1246, %v1189
    %v1248 = vpop.permute.xlu0 %1247
    %1251 = vset.pattern.permute.xlu0 0
    %1252 = vperm.xlu0 %1251, %v1190
    %v1253 = vpop.permute.xlu0 %1252
    %1256 = vset.pattern.permute.xlu0 0
    %1257 = vperm.xlu0 %1256, %v1191
    %v1258 = vpop.permute.xlu0 %1257
    %1261 = vset.pattern.permute.xlu0 0
    %1262 = vperm.xlu0 %1261, %v1192
    %v1263 = vpop.permute.xlu0 %1262
    %1266 = vset.pattern.permute.xlu0 0
    %1267 = vperm.xlu0 %1266, %v1193
    %v1268 = vpop.permute.xlu0 %1267
    %1271 = vset.pattern.permute.xlu0 0
    %1272 = vperm.xlu0 %1271, %v1194
    %v1273 = vpop.permute.xlu0 %1272
    %1276 = vset.pattern.permute.xlu0 0
    %1277 = vperm.xlu0 %1276, %v1195
    %v1278 = vpop.permute.xlu0 %1277
    %1281 = vset.pattern.permute.xlu0 0
    %1282 = vperm.xlu0 %1281, %v1196
    %v1283 = vpop.permute.xlu0 %1282
    %1286 = vset.pattern.permute.xlu0 0
    %1287 = vperm.xlu0 %1286, %v1197
    %v1288 = vpop.permute.xlu0 %1287
    %1291 = vset.pattern.permute.xlu0 0
    %1292 = vperm.xlu0 %1291, %v1198
    %v1293 = vpop.permute.xlu0 %1292
    %1296 = vset.pattern.permute.xlu0 0
    %1297 = vperm.xlu0 %1296, %v1199
    %v1298 = vpop.permute.xlu0 %1297
    %1301 = vset.pattern.permute.xlu0 0
    %1302 = vperm.xlu0 %1301, %v1200
    %v1303 = vpop.permute.xlu0 %1302
    %1306 = vset.pattern.permute.xlu0 0
    %1307 = vperm.xlu0 %1306, %v1201
    %v1308 = vpop.permute.xlu0 %1307
    %1311 = vset.pattern.permute.xlu0 0
    %1312 = vperm.xlu0 %1311, %v1202
    %v1313 = vpop.permute.xlu0 %1312
    %1316 = vset.pattern.permute.xlu0 0
    %1317 = vperm.xlu0 %1316, %v1203
    %v1318 = vpop.permute.xlu0 %1317
    %1321 = vset.pattern.permute.xlu0 0
    %1322 = vperm.xlu0 %1321, %v1204
    %v1323 = vpop.permute.xlu0 %1322
    %1326 = vset.pattern.permute.xlu0 0
    %1327 = vperm.xlu0 %1326, %v1205
    %v1328 = vpop.permute.xlu0 %1327
    %1331 = vset.pattern.permute.xlu0 0
    %1332 = vperm.xlu0 %1331, %v1206
    %v1333 = vpop.permute.xlu0 %1332
    %1336 = vset.pattern.permute.xlu0 0
    %1337 = vperm.xlu0 %1336, %v1207
    %v1338 = vpop.permute.xlu0 %1337
    %1341 = vset.pattern.permute.xlu0 0
    %1342 = vperm.xlu0 %1341, %v1208
    %v1343 = vpop.permute.xlu0 %1342
    %1346 = vset.pattern.permute.xlu0 0
    %1347 = vperm.xlu0 %1346, %v1209
    %v1348 = vpop.permute.xlu0 %1347
    %1351 = vset.pattern.permute.xlu0 0
    %1352 = vperm.xlu0 %1351, %v1210
    %v1353 = vpop.permute.xlu0 %1352
    %1356 = vset.pattern.permute.xlu0 0
    %1357 = vperm.xlu0 %1356, %v1211
    %v1358 = vpop.permute.xlu0 %1357
    %1361 = vset.pattern.permute.xlu0 0
    %1362 = vperm.xlu0 %1361, %v1212
    %v1363 = vpop.permute.xlu0 %1362
    %1366 = vset.pattern.permute.xlu0 0
    %1367 = vperm.xlu0 %1366, %v1213
    %v1368 = vpop.permute.xlu0 %1367
    %1371 = vset.pattern.permute.xlu0 0
    %1372 = vperm.xlu0 %1371, %v1214
    %v1373 = vpop.permute.xlu0 %1372
    %v1407 = vunpack.c.l.b16 %v1135
    %v1408 = vunpack.c.h.b16 %v1135
    %v1409 = vunpack.c.l.b16 %v1136
    %v1410 = vunpack.c.h.b16 %v1136
    %v1411 = vunpack.c.l.b16 %v1137
    %v1412 = vunpack.c.h.b16 %v1137
    %v1413 = vunpack.c.l.b16 %v1138
    %v1414 = vunpack.c.h.b16 %v1138
    %v1415 = vunpack.c.l.b16 %v1139
    %v1416 = vunpack.c.h.b16 %v1139
    %v1417 = vunpack.c.l.b16 %v1140
    %v1418 = vunpack.c.h.b16 %v1140
    %v1419 = vunpack.c.l.b16 %v1141
    %v1420 = vunpack.c.h.b16 %v1141
    %v1421 = vunpack.c.l.b16 %v1142
    %v1422 = vunpack.c.h.b16 %v1142
    %v1423 = vunpack.c.l.b16 %v1143
    %v1424 = vunpack.c.h.b16 %v1143
    %v1425 = vunpack.c.l.b16 %v1144
    %v1426 = vunpack.c.h.b16 %v1144
    %v1427 = vunpack.c.l.b16 %v1145
    %v1428 = vunpack.c.h.b16 %v1145
    %v1429 = vunpack.c.l.b16 %v1146
    %v1430 = vunpack.c.h.b16 %v1146
    %v1431 = vunpack.c.l.b16 %v1147
    %v1432 = vunpack.c.h.b16 %v1147
    %v1433 = vunpack.c.l.b16 %v1148
    %v1434 = vunpack.c.h.b16 %v1148
    %v1435 = vunpack.c.l.b16 %v1149
    %v1436 = vunpack.c.h.b16 %v1149
    %v1437 = vunpack.c.l.b16 %v1150
    %v1438 = vunpack.c.h.b16 %v1150
    %v1439 = vunpack.c.l.b16 %v1151
    %v1440 = vunpack.c.h.b16 %v1151
    %v1441 = vunpack.c.l.b16 %v1152
    %v1442 = vunpack.c.h.b16 %v1152
    %v1443 = vunpack.c.l.b16 %v1153
    %v1444 = vunpack.c.h.b16 %v1153
    %v1445 = vunpack.c.l.b16 %v1154
    %v1446 = vunpack.c.h.b16 %v1154
    %v1447 = vunpack.c.l.b16 %v1155
    %v1448 = vunpack.c.h.b16 %v1155
    %v1449 = vunpack.c.l.b16 %v1156
    %v1450 = vunpack.c.h.b16 %v1156
    %v1451 = vunpack.c.l.b16 %v1157
    %v1452 = vunpack.c.h.b16 %v1157
    %v1453 = vunpack.c.l.b16 %v1158
    %v1454 = vunpack.c.h.b16 %v1158
    %v1455 = vunpack.c.l.b16 %v1159
    %v1456 = vunpack.c.h.b16 %v1159
    %v1457 = vunpack.c.l.b16 %v1160
    %v1458 = vunpack.c.h.b16 %v1160
    %v1459 = vunpack.c.l.b16 %v1161
    %v1460 = vunpack.c.h.b16 %v1161
    %v1461 = vunpack.c.l.b16 %v1162
    %v1462 = vunpack.c.h.b16 %v1162
    %v1463 = vunpack.c.l.b16 %v1163
    %v1464 = vunpack.c.h.b16 %v1163
    %v1465 = vunpack.c.l.b16 %v1164
    %v1466 = vunpack.c.h.b16 %v1164
    %v1467 = vunpack.c.l.b16 %v1165
    %v1468 = vunpack.c.h.b16 %v1165
    %v1469 = vunpack.c.l.b16 %v1166
    %v1470 = vunpack.c.h.b16 %v1166
    %v1471 = vpack.c.b16 %v1409, %v1407
    %v1472 = vpack.c.b16 %v1410, %v1408
    %v1473 = vpack.c.b16 %v1413, %v1411
    %v1474 = vpack.c.b16 %v1414, %v1412
    %v1475 = vpack.c.b16 %v1417, %v1415
    %v1476 = vpack.c.b16 %v1418, %v1416
    %v1477 = vpack.c.b16 %v1421, %v1419
    %v1478 = vpack.c.b16 %v1422, %v1420
    %v1479 = vpack.c.b16 %v1425, %v1423
    %v1480 = vpack.c.b16 %v1426, %v1424
    %v1481 = vpack.c.b16 %v1429, %v1427
    %v1482 = vpack.c.b16 %v1430, %v1428
    %v1483 = vpack.c.b16 %v1433, %v1431
    %v1484 = vpack.c.b16 %v1434, %v1432
    %v1485 = vpack.c.b16 %v1437, %v1435
    %v1486 = vpack.c.b16 %v1438, %v1436
    %v1487 = vpack.c.b16 %v1441, %v1439
    %v1488 = vpack.c.b16 %v1442, %v1440
    %v1489 = vpack.c.b16 %v1445, %v1443
    %v1490 = vpack.c.b16 %v1446, %v1444
    %v1491 = vpack.c.b16 %v1449, %v1447
    %v1492 = vpack.c.b16 %v1450, %v1448
    %v1493 = vpack.c.b16 %v1453, %v1451
    %v1494 = vpack.c.b16 %v1454, %v1452
    %v1495 = vpack.c.b16 %v1457, %v1455
    %v1496 = vpack.c.b16 %v1458, %v1456
    %v1497 = vpack.c.b16 %v1461, %v1459
    %v1498 = vpack.c.b16 %v1462, %v1460
    %v1499 = vpack.c.b16 %v1465, %v1463
    %v1500 = vpack.c.b16 %v1466, %v1464
    %v1501 = vpack.c.b16 %v1469, %v1467
    %v1502 = vpack.c.b16 %v1470, %v1468
    %1535 = vmatprep.subr.bf16.mxu0 0
    %1536 = vmatpush1.bf16.msra.mxu0 %v1167
    %1537 = vmatprep.subr.bf16.mxu0 0
    %1538 = vmatpush1.bf16.msra.mxu0 %v1168
    %1539 = vmatprep.subr.bf16.mxu0 0
    %1540 = vmatpush1.bf16.msra.mxu0 %v1169
    %1541 = vmatprep.subr.bf16.mxu0 0
    %1542 = vmatpush1.bf16.msra.mxu0 %v1170
    %1543 = vmatprep.subr.bf16.mxu0 0
    %1544 = vmatpush1.bf16.msra.mxu0 %v1171
    %1545 = vmatprep.subr.bf16.mxu0 0
    %1546 = vmatpush1.bf16.msra.mxu0 %v1172
    %1547 = vmatprep.subr.bf16.mxu0 0
    %1548 = vmatpush1.bf16.msra.mxu0 %v1173
    %1549 = vmatprep.subr.bf16.mxu0 0
    %1550 = vmatpush1.bf16.msra.mxu0 %v1174
    %1551 = vmatprep.subr.bf16.mxu0 0
    %1552 = vmatpush1.bf16.msra.mxu0 %v1175
    %1553 = vmatprep.subr.bf16.mxu0 0
    %1554 = vmatpush1.bf16.msra.mxu0 %v1176
    %1555 = vmatprep.subr.bf16.mxu0 0
    %1556 = vmatpush1.bf16.msra.mxu0 %v1177
    %1557 = vmatprep.subr.bf16.mxu0 0
    %1558 = vmatpush1.bf16.msra.mxu0 %v1178
    %1559 = vmatprep.subr.bf16.mxu0 0
    %1560 = vmatpush1.bf16.msra.mxu0 %v1179
    %1561 = vmatprep.subr.bf16.mxu0 0
    %1562 = vmatpush1.bf16.msra.mxu0 %v1180
    %1563 = vmatprep.subr.bf16.mxu0 0
    %1564 = vmatpush1.bf16.msra.mxu0 %v1181
    %1565 = vmatprep.subr.bf16.mxu0 0
    %1566 = vmatpush1.bf16.msra.mxu0 %v1182
    %1567 = vmatprep.mubr.bf16.mxu0 %v1472
    %1568 = vmatmul.mubr.bf16.gmra.mrb[0].mxu0 %v1471
    %v1569 = vpop.f32.mrb[0].mxu0
    %v1570 = vadd.f32 %v1218, %v1569
    %v1571 = vpop.f32.mrb[0].mxu0
    %v1572 = vpop.f32.mrb[0].mxu0
    %v1573 = vadd.f32 %v1223, %v1572
    %v1574 = vpop.f32.mrb[0].mxu0
    %1575 = vmatprep.mubr.bf16.mxu0 %v1474
    %1576 = vmatmul.mubr.bf16.gmra.mrb[0].mxu0 %v1473
    %v1577 = vpop.f32.mrb[0].mxu0
    %v1578 = vadd.f32 %v1228, %v1577
    %v1579 = vpop.f32.mrb[0].mxu0
    %v1580 = vpop.f32.mrb[0].mxu0
    %v1581 = vadd.f32 %v1233, %v1580
    %v1582 = vpop.f32.mrb[0].mxu0
    %1583 = vmatprep.mubr.bf16.mxu0 %v1476
    %1584 = vmatmul.mubr.bf16.gmra.mrb[0].mxu0 %v1475
    %v1585 = vpop.f32.mrb[0].mxu0
    %v1586 = vadd.f32 %v1238, %v1585
    %v1587 = vpop.f32.mrb[0].mxu0
    %v1588 = vpop.f32.mrb[0].mxu0
    %v1589 = vadd.f32 %v1243, %v1588
    %v1590 = vpop.f32.mrb[0].mxu0
    %1591 = vmatprep.mubr.bf16.mxu0 %v1478
    %1592 = vmatmul.mubr.bf16.gmra.mrb[0].mxu0 %v1477
    %v1593 = vpop.f32.mrb[0].mxu0
    %v1594 = vadd.f32 %v1248, %v1593
    %v1595 = vpop.f32.mrb[0].mxu0
    %v1596 = vpop.f32.mrb[0].mxu0
    %v1597 = vadd.f32 %v1253, %v1596
    %v1598 = vpop.f32.mrb[0].mxu0
    %1599 = vmatprep.mubr.bf16.mxu0 %v1480
    %1600 = vmatmul.mubr.bf16.gmra.mrb[0].mxu0 %v1479
    %v1601 = vpop.f32.mrb[0].mxu0
    %v1602 = vadd.f32 %v1258, %v1601
    %v1603 = vpop.f32.mrb[0].mxu0
    %v1604 = vpop.f32.mrb[0].mxu0
    %v1605 = vadd.f32 %v1263, %v1604
    %v1606 = vpop.f32.mrb[0].mxu0
    %1607 = vmatprep.mubr.bf16.mxu0 %v1482
    %1608 = vmatmul.mubr.bf16.gmra.mrb[0].mxu0 %v1481
    %v1609 = vpop.f32.mrb[0].mxu0
    %v1610 = vadd.f32 %v1268, %v1609
    %v1611 = vpop.f32.mrb[0].mxu0
    %v1612 = vpop.f32.mrb[0].mxu0
    %v1613 = vadd.f32 %v1273, %v1612
    %v1614 = vpop.f32.mrb[0].mxu0
    %1615 = vmatprep.mubr.bf16.mxu0 %v1484
    %1616 = vmatmul.mubr.bf16.gmra.mrb[0].mxu0 %v1483
    %v1617 = vpop.f32.mrb[0].mxu0
    %v1618 = vadd.f32 %v1278, %v1617
    %v1619 = vpop.f32.mrb[0].mxu0
    %v1620 = vpop.f32.mrb[0].mxu0
    %v1621 = vadd.f32 %v1283, %v1620
    %v1622 = vpop.f32.mrb[0].mxu0
    %1623 = vmatprep.mubr.bf16.mxu0 %v1486
    %1624 = vmatmul.mubr.bf16.gmra.mrb[0].mxu0 %v1485
    %v1625 = vpop.f32.mrb[0].mxu0
    %v1626 = vadd.f32 %v1288, %v1625
    %v1627 = vpop.f32.mrb[0].mxu0
    %v1628 = vpop.f32.mrb[0].mxu0
    %v1629 = vadd.f32 %v1293, %v1628
    %v1630 = vpop.f32.mrb[0].mxu0
    %1631 = vmatprep.mubr.bf16.mxu0 %v1488
    %1632 = vmatmul.mubr.bf16.gmra.mrb[0].mxu0 %v1487
    %v1633 = vpop.f32.mrb[0].mxu0
    %v1634 = vadd.f32 %v1298, %v1633
    %v1635 = vpop.f32.mrb[0].mxu0
    %v1636 = vpop.f32.mrb[0].mxu0
    %v1637 = vadd.f32 %v1303, %v1636
    %v1638 = vpop.f32.mrb[0].mxu0
    %1639 = vmatprep.mubr.bf16.mxu0 %v1490
    %1640 = vmatmul.mubr.bf16.gmra.mrb[0].mxu0 %v1489
    %v1641 = vpop.f32.mrb[0].mxu0
    %v1642 = vadd.f32 %v1308, %v1641
    %v1643 = vpop.f32.mrb[0].mxu0
    %v1644 = vpop.f32.mrb[0].mxu0
    %v1645 = vadd.f32 %v1313, %v1644
    %v1646 = vpop.f32.mrb[0].mxu0
    %1647 = vmatprep.mubr.bf16.mxu0 %v1492
    %1648 = vmatmul.mubr.bf16.gmra.mrb[0].mxu0 %v1491
    %v1649 = vpop.f32.mrb[0].mxu0
    %v1650 = vadd.f32 %v1318, %v1649
    %v1651 = vpop.f32.mrb[0].mxu0
    %v1652 = vpop.f32.mrb[0].mxu0
    %v1653 = vadd.f32 %v1323, %v1652
    %v1654 = vpop.f32.mrb[0].mxu0
    %1655 = vmatprep.mubr.bf16.mxu0 %v1494
    %1656 = vmatmul.mubr.bf16.gmra.mrb[0].mxu0 %v1493
    %v1657 = vpop.f32.mrb[0].mxu0
    %v1658 = vadd.f32 %v1328, %v1657
    %v1659 = vpop.f32.mrb[0].mxu0
    %v1660 = vpop.f32.mrb[0].mxu0
    %v1661 = vadd.f32 %v1333, %v1660
    %v1662 = vpop.f32.mrb[0].mxu0
    %1663 = vmatprep.mubr.bf16.mxu0 %v1496
    %1664 = vmatmul.mubr.bf16.gmra.mrb[0].mxu0 %v1495
    %v1665 = vpop.f32.mrb[0].mxu0
    %v1666 = vadd.f32 %v1338, %v1665
    %v1667 = vpop.f32.mrb[0].mxu0
    %v1668 = vpop.f32.mrb[0].mxu0
    %v1669 = vadd.f32 %v1343, %v1668
    %v1670 = vpop.f32.mrb[0].mxu0
    %1671 = vmatprep.mubr.bf16.mxu0 %v1498
    %1672 = vmatmul.mubr.bf16.gmra.mrb[0].mxu0 %v1497
    %v1673 = vpop.f32.mrb[0].mxu0
    %v1674 = vadd.f32 %v1348, %v1673
    %v1675 = vpop.f32.mrb[0].mxu0
    %v1676 = vpop.f32.mrb[0].mxu0
    %v1677 = vadd.f32 %v1353, %v1676
    %v1678 = vpop.f32.mrb[0].mxu0
    %1679 = vmatprep.mubr.bf16.mxu0 %v1500
    %1680 = vmatmul.mubr.bf16.gmra.mrb[0].mxu0 %v1499
    %v1681 = vpop.f32.mrb[0].mxu0
    %v1682 = vadd.f32 %v1358, %v1681
    %v1683 = vpop.f32.mrb[0].mxu0
    %v1684 = vpop.f32.mrb[0].mxu0
    %v1685 = vadd.f32 %v1363, %v1684
    %v1686 = vpop.f32.mrb[0].mxu0
    %1687 = vmatprep.mubr.bf16.mxu0 %v1502
    %1688 = vmatmul.mubr.bf16.gmra.mrb[0].mxu0 %v1501
    %v1689 = vpop.f32.mrb[0].mxu0
    %v1690 = vadd.f32 %v1368, %v1689
    %v1691 = vpop.f32.mrb[0].mxu0
    %v1692 = vpop.f32.mrb[0].mxu0
    %v1693 = vadd.f32 %v1373, %v1692
    %v1694 = vpop.f32.mrb[0].mxu0
    %1695 = vdwg.mxu0
    %v1696 = vmax.f32 %v1570, 0.0
    %v1697 = vmax.f32 %v1573, 0.0
    %v1698 = vmax.f32 %v1578, 0.0
    %v1699 = vmax.f32 %v1581, 0.0
    %v1700 = vmax.f32 %v1586, 0.0
    %v1701 = vmax.f32 %v1589, 0.0
    %v1702 = vmax.f32 %v1594, 0.0
    %v1703 = vmax.f32 %v1597, 0.0
    %v1704 = vmax.f32 %v1602, 0.0
    %v1705 = vmax.f32 %v1605, 0.0
    %v1706 = vmax.f32 %v1610, 0.0
    %v1707 = vmax.f32 %v1613, 0.0
    %v1708 = vmax.f32 %v1618, 0.0
    %v1709 = vmax.f32 %v1621, 0.0
    %v1710 = vmax.f32 %v1626, 0.0
    %v1711 = vmax.f32 %v1629, 0.0
    %v1712 = vmax.f32 %v1634, 0.0
    %v1713 = vmax.f32 %v1637, 0.0
    %v1714 = vmax.f32 %v1642, 0.0
    %v1715 = vmax.f32 %v1645, 0.0
    %v1716 = vmax.f32 %v1650, 0.0
    %v1717 = vmax.f32 %v1653, 0.0
    %v1718 = vmax.f32 %v1658, 0.0
    %v1719 = vmax.f32 %v1661, 0.0
    %v1720 = vmax.f32 %v1666, 0.0
    %v1721 = vmax.f32 %v1669, 0.0
    %v1722 = vmax.f32 %v1674, 0.0
    %v1723 = vmax.f32 %v1677, 0.0
    %v1724 = vmax.f32 %v1682, 0.0
    %v1725 = vmax.f32 %v1685, 0.0
    %v1726 = vmax.f32 %v1690, 0.0
    %v1727 = vmax.f32 %v1693, 0.0
    %v1728 = vld [vmem:[%s5] sm:$0xf]
    %v1729 = vld [vmem:[%s5 + $0x4] sm:$0xf]
    %v1730 = vld [vmem:[%s5 + $0x8] sm:$0xf]
    %v1731 = vld [vmem:[%s5 + $0xc] sm:$0xf]
    %v1732 = vld [vmem:[%s5 + $0x10] sm:$0xf]
    %v1733 = vld [vmem:[%s5 + $0x14] sm:$0xf]
    %v1734 = vld [vmem:[%s5 + $0x18] sm:$0xf]
    %v1735 = vld [vmem:[%s5 + $0x1c] sm:$0xf]
    %v1736 = vld [vmem:[%s5 + $0x20] sm:$0xf]
    %v1737 = vld [vmem:[%s5 + $0x24] sm:$0xf]
    %v1738 = vld [vmem:[%s5 + $0x28] sm:$0xf]
    %v1739 = vld [vmem:[%s5 + $0x2c] sm:$0xf]
    %v1740 = vld [vmem:[%s5 + $0x30] sm:$0xf]
    %v1741 = vld [vmem:[%s5 + $0x34] sm:$0xf]
    %v1742 = vld [vmem:[%s5 + $0x38] sm:$0xf]
    %v1743 = vld [vmem:[%s5 + $0x3c] sm:$0xf]
    %v1744 = vld [vmem:[%s5 + $0x40] sm:$0xf]
    %v1745 = vld [vmem:[%s5 + $0x44] sm:$0xf]
    %v1746 = vld [vmem:[%s5 + $0x48] sm:$0xf]
    %v1747 = vld [vmem:[%s5 + $0x4c] sm:$0xf]
    %v1748 = vld [vmem:[%s5 + $0x50] sm:$0xf]
    %v1749 = vld [vmem:[%s5 + $0x54] sm:$0xf]
    %v1750 = vld [vmem:[%s5 + $0x58] sm:$0xf]
    %v1751 = vld [vmem:[%s5 + $0x5c] sm:$0xf]
    %v1752 = vld [vmem:[%s5 + $0x60] sm:$0xf]
    %v1753 = vld [vmem:[%s5 + $0x64] sm:$0xf]
    %v1754 = vld [vmem:[%s5 + $0x68] sm:$0xf]
    %v1755 = vld [vmem:[%s5 + $0x6c] sm:$0xf]
    %v1756 = vld [vmem:[%s5 + $0x70] sm:$0xf]
    %v1757 = vld [vmem:[%s5 + $0x74] sm:$0xf]
    %v1758 = vld [vmem:[%s5 + $0x78] sm:$0xf]
    %v1759 = vld [vmem:[%s5 + $0x7c] sm:$0xf]
    %v1760 = vunpack.c.l.bf16 %v1728
    %v1761 = vunpack.c.l.bf16 %v1729
    %v1762 = vunpack.c.l.bf16 %v1730
    %v1763 = vunpack.c.l.bf16 %v1731
    %v1764 = vunpack.c.l.bf16 %v1732
    %v1765 = vunpack.c.l.bf16 %v1733
    %v1766 = vunpack.c.l.bf16 %v1734
    %v1767 = vunpack.c.l.bf16 %v1735
    %v1768 = vunpack.c.l.bf16 %v1736
    %v1769 = vunpack.c.l.bf16 %v1737
    %v1770 = vunpack.c.l.bf16 %v1738
    %v1771 = vunpack.c.l.bf16 %v1739
    %v1772 = vunpack.c.l.bf16 %v1740
    %v1773 = vunpack.c.l.bf16 %v1741
    %v1774 = vunpack.c.l.bf16 %v1742
    %v1775 = vunpack.c.l.bf16 %v1743
    %v1776 = vunpack.c.l.bf16 %v1744
    %v1777 = vunpack.c.l.bf16 %v1745
    %v1778 = vunpack.c.l.bf16 %v1746
    %v1779 = vunpack.c.l.bf16 %v1747
    %v1780 = vunpack.c.l.bf16 %v1748
    %v1781 = vunpack.c.l.bf16 %v1749
    %v1782 = vunpack.c.l.bf16 %v1750
    %v1783 = vunpack.c.l.bf16 %v1751
    %v1784 = vunpack.c.l.bf16 %v1752
    %v1785 = vunpack.c.l.bf16 %v1753
    %v1786 = vunpack.c.l.bf16 %v1754
    %v1787 = vunpack.c.l.bf16 %v1755
    %v1788 = vunpack.c.l.bf16 %v1756
    %v1789 = vunpack.c.l.bf16 %v1757
    %v1790 = vunpack.c.l.bf16 %v1758
    %v1791 = vunpack.c.l.bf16 %v1759
    %1793 = vset.pattern.permute.xlu0 0
    %1794 = vperm.xlu0 %1793, %v1760
    %v1795 = vpop.permute.xlu0 %1794
    %1798 = vset.pattern.permute.xlu0 0
    %1799 = vperm.xlu0 %1798, %v1761
    %v1800 = vpop.permute.xlu0 %1799
    %1803 = vset.pattern.permute.xlu0 0
    %1804 = vperm.xlu0 %1803, %v1762
    %v1805 = vpop.permute.xlu0 %1804
    %1808 = vset.pattern.permute.xlu0 0
    %1809 = vperm.xlu0 %1808, %v1763
    %v1810 = vpop.permute.xlu0 %1809
    %1813 = vset.pattern.permute.xlu0 0
    %1814 = vperm.xlu0 %1813, %v1764
    %v1815 = vpop.permute.xlu0 %1814
    %1818 = vset.pattern.permute.xlu0 0
    %1819 = vperm.xlu0 %1818, %v1765
    %v1820 = vpop.permute.xlu0 %1819
    %1823 = vset.pattern.permute.xlu0 0
    %1824 = vperm.xlu0 %1823, %v1766
    %v1825 = vpop.permute.xlu0 %1824
    %1828 = vset.pattern.permute.xlu0 0
    %1829 = vperm.xlu0 %1828, %v1767
    %v1830 = vpop.permute.xlu0 %1829
    %1833 = vset.pattern.permute.xlu0 0
    %1834 = vperm.xlu0 %1833, %v1768
    %v1835 = vpop.permute.xlu0 %1834
    %1838 = vset.pattern.permute.xlu0 0
    %1839 = vperm.xlu0 %1838, %v1769
    %v1840 = vpop.permute.xlu0 %1839
    %1843 = vset.pattern.permute.xlu0 0
    %1844 = vperm.xlu0 %1843, %v1770
    %v1845 = vpop.permute.xlu0 %1844
    %1848 = vset.pattern.permute.xlu0 0
    %1849 = vperm.xlu0 %1848, %v1771
    %v1850 = vpop.permute.xlu0 %1849
    %1853 = vset.pattern.permute.xlu0 0
    %1854 = vperm.xlu0 %1853, %v1772
    %v1855 = vpop.permute.xlu0 %1854
    %1858 = vset.pattern.permute.xlu0 0
    %1859 = vperm.xlu0 %1858, %v1773
    %v1860 = vpop.permute.xlu0 %1859
    %1863 = vset.pattern.permute.xlu0 0
    %1864 = vperm.xlu0 %1863, %v1774
    %v1865 = vpop.permute.xlu0 %1864
    %1868 = vset.pattern.permute.xlu0 0
    %1869 = vperm.xlu0 %1868, %v1775
    %v1870 = vpop.permute.xlu0 %1869
    %1873 = vset.pattern.permute.xlu0 0
    %1874 = vperm.xlu0 %1873, %v1776
    %v1875 = vpop.permute.xlu0 %1874
    %1878 = vset.pattern.permute.xlu0 0
    %1879 = vperm.xlu0 %1878, %v1777
    %v1880 = vpop.permute.xlu0 %1879
    %1883 = vset.pattern.permute.xlu0 0
    %1884 = vperm.xlu0 %1883, %v1778
    %v1885 = vpop.permute.xlu0 %1884
    %1888 = vset.pattern.permute.xlu0 0
    %1889 = vperm.xlu0 %1888, %v1779
    %v1890 = vpop.permute.xlu0 %1889
    %1893 = vset.pattern.permute.xlu0 0
    %1894 = vperm.xlu0 %1893, %v1780
    %v1895 = vpop.permute.xlu0 %1894
    %1898 = vset.pattern.permute.xlu0 0
    %1899 = vperm.xlu0 %1898, %v1781
    %v1900 = vpop.permute.xlu0 %1899
    %1903 = vset.pattern.permute.xlu0 0
    %1904 = vperm.xlu0 %1903, %v1782
    %v1905 = vpop.permute.xlu0 %1904
    %1908 = vset.pattern.permute.xlu0 0
    %1909 = vperm.xlu0 %1908, %v1783
    %v1910 = vpop.permute.xlu0 %1909
    %1913 = vset.pattern.permute.xlu0 0
    %1914 = vperm.xlu0 %1913, %v1784
    %v1915 = vpop.permute.xlu0 %1914
    %1918 = vset.pattern.permute.xlu0 0
    %1919 = vperm.xlu0 %1918, %v1785
    %v1920 = vpop.permute.xlu0 %1919
    %1923 = vset.pattern.permute.xlu0 0
    %1924 = vperm.xlu0 %1923, %v1786
    %v1925 = vpop.permute.xlu0 %1924
    %1928 = vset.pattern.permute.xlu0 0
    %1929 = vperm.xlu0 %1928, %v1787
    %v1930 = vpop.permute.xlu0 %1929
    %1933 = vset.pattern.permute.xlu0 0
    %1934 = vperm.xlu0 %1933, %v1788
    %v1935 = vpop.permute.xlu0 %1934
    %1938 = vset.pattern.permute.xlu0 0
    %1939 = vperm.xlu0 %1938, %v1789
    %v1940 = vpop.permute.xlu0 %1939
    %1943 = vset.pattern.permute.xlu0 0
    %1944 = vperm.xlu0 %1943, %v1790
    %v1945 = vpop.permute.xlu0 %1944
    %1948 = vset.pattern.permute.xlu0 0
    %1949 = vperm.xlu0 %1948, %v1791
    %v1950 = vpop.permute.xlu0 %1949
    %v1952 = vmul.f32 %v1696, %v1795
    %v1953 = vmul.f32 %v1697, %v1800
    %v1954 = vmul.f32 %v1698, %v1805
    %v1955 = vmul.f32 %v1699, %v1810
    %v1956 = vmul.f32 %v1700, %v1815
    %v1957 = vmul.f32 %v1701, %v1820
    %v1958 = vmul.f32 %v1702, %v1825
    %v1959 = vmul.f32 %v1703, %v1830
    %v1960 = vmul.f32 %v1704, %v1835
    %v1961 = vmul.f32 %v1705, %v1840
    %v1962 = vmul.f32 %v1706, %v1845
    %v1963 = vmul.f32 %v1707, %v1850
    %v1964 = vmul.f32 %v1708, %v1855
    %v1965 = vmul.f32 %v1709, %v1860
    %v1966 = vmul.f32 %v1710, %v1865
    %v1967 = vmul.f32 %v1711, %v1870
    %v1968 = vmul.f32 %v1712, %v1875
    %v1969 = vmul.f32 %v1713, %v1880
    %v1970 = vmul.f32 %v1714, %v1885
    %v1971 = vmul.f32 %v1715, %v1890
    %v1972 = vmul.f32 %v1716, %v1895
    %v1973 = vmul.f32 %v1717, %v1900
    %v1974 = vmul.f32 %v1718, %v1905
    %v1975 = vmul.f32 %v1719, %v1910
    %v1976 = vmul.f32 %v1720, %v1915
    %v1977 = vmul.f32 %v1721, %v1920
    %v1978 = vmul.f32 %v1722, %v1925
    %v1979 = vmul.f32 %v1723, %v1930
    %v1980 = vmul.f32 %v1724, %v1935
    %v1981 = vmul.f32 %v1725, %v1940
    %v1982 = vmul.f32 %v1726, %v1945
    %v1983 = vmul.f32 %v1727, %v1950
    %v1984 = vadd.f32 %v1952, %v1953
    %v1985 = vadd.f32 %v1984, %v1954
    %v1986 = vadd.f32 %v1985, %v1955
    %v1987 = vadd.f32 %v1986, %v1956
    %v1988 = vadd.f32 %v1987, %v1957
    %v1989 = vadd.f32 %v1988, %v1958
    %v1990 = vadd.f32 %v1989, %v1959
    %v1991 = vadd.f32 %v1990, %v1960
    %v1992 = vadd.f32 %v1991, %v1961
    %v1993 = vadd.f32 %v1992, %v1962
    %v1994 = vadd.f32 %v1993, %v1963
    %v1995 = vadd.f32 %v1994, %v1964
    %v1996 = vadd.f32 %v1995, %v1965
    %v1997 = vadd.f32 %v1996, %v1966
    %v1998 = vadd.f32 %v1997, %v1967
    %v1999 = vadd.f32 %v1998, %v1968
    %v2000 = vadd.f32 %v1999, %v1969
    %v2001 = vadd.f32 %v2000, %v1970
    %v2002 = vadd.f32 %v2001, %v1971
    %v2003 = vadd.f32 %v2002, %v1972
    %v2004 = vadd.f32 %v2003, %v1973
    %v2005 = vadd.f32 %v2004, %v1974
    %v2006 = vadd.f32 %v2005, %v1975
    %v2007 = vadd.f32 %v2006, %v1976
    %v2008 = vadd.f32 %v2007, %v1977
    %v2009 = vadd.f32 %v2008, %v1978
    %v2010 = vadd.f32 %v2009, %v1979
    %v2011 = vadd.f32 %v2010, %v1980
    %v2012 = vadd.f32 %v2011, %v1981
    %v2013 = vadd.f32 %v2012, %v1982
    %v2014 = vadd.f32 %v2013, %v1983
    %v2015 = vrot.slane %v2014, 4
    %v2016 = vadd.f32 %v2014, %v2015
    %v2017 = vrot.slane %v2016, 2
    %v2018 = vadd.f32 %v2016, %v2017
    %v2019 = vrot.slane %v2018, 1
    %v2020 = vadd.f32 %v2018, %v2019
    %v2021 = vld [vmem:[#allocation2] sm:$0x1]
    %2023 = vset.pattern.permute.xlu0 0
    %2024 = vperm.xlu0 %2023, %v2021
    %v2025 = vpop.permute.xlu0 %2024
    %v2027 = vlaneseq
    %v2028 = vshrl.u32 %v2027, 7
    %v2029 = vsub.s32 0, %v2028
    %v2030 = vrot.slane %v2025, %v2029
    %v2031 = vadd.f32 %v2020, %v2030
    %2032 = vst [vmem:[#allocation3] sm:$0x1] %v2031
    // Predicated region
    $region30: #{tpu_custom_call.1} parent=1 // pred_check
      _
    $region31: #{tpu_custom_call.1} parent=1 // pred_check_branch
      %2034 = sbr.rel (0) target = $region33
    $region32: #{tpu_custom_call.1} parent=1 // pred_region
      %s2036 = ssub.s32 16, 16
      %2037 = vsyncadd [#allocation4], %s2036
      %s2039 = sshll.u32 [#allocation3], 4
      %s2040 = int_to_ptr.vmem [resolvable:$true] %s2039
      %2042 = dma.vmem_to_hbm [thread:$0]  %s2040, 16, %s7, [#allocation4]
    $region33: #{tpu_custom_call.1} parent=1 // pred_fallthru
      _
    // Predicated region
    $region34: #{tpu_custom_call.1} parent=1 // pred_check
      _
    $region35: #{tpu_custom_call.1} parent=1 // pred_check_branch
      %2044 = sbr.rel (0) target = $region37
    $region36: #{tpu_custom_call.1} parent=1 // pred_region
      %2045 = dma.done [#allocation4], 16
    $region37: #{tpu_custom_call.1} parent=1 // pred_fallthru
      _
    %2046 = vsyncpa [#allocation4], 1

</llo_original>
